<compile_context>
chip_gen: v6e
topology: v6e:2x2x1
jax: 0.10.0
libtpu: 0.0.40
codegen_flags: <defaults>
</compile_context>

<pallas_src>
import functools

import jax
import jax.numpy as jnp
from jax import lax
from jax.experimental import pallas as pl
from jax.experimental.pallas import tpu as pltpu


# ----------------------------------------------------------------------------
# Pallas kernel: one LSTM layer, both directions, full (padded) sequence.
# Grid = (directions, num_time_blocks). Gate order matches PyTorch: i, f, g, o.
# ----------------------------------------------------------------------------
def _make_lstm_kernel(T_total, T_blk, nT, H, num_dirs):
    # Number of real (non-padded) timesteps inside the last *natural* block.
    last_blk_valid = T_total - (nT - 1) * T_blk

    def kernel(gx_ref, whh_ref, h0_ref, c0_ref,     # inputs (auto-pipelined VMEM)
               y_ref, hN_ref, cN_ref,               # outputs
               h_s, c_s):                           # scratch (recurrent state)
        d = pl.program_id(0)      # direction (0 = forward, 1 = backward)
        tb = pl.program_id(1)     # time-block counter in *processing* order

        # Cheap VMEM->VMEM state init once per direction; h0/c0 blocks arrive
        # via the auto-pipeline (no manual DMA, no exposed HBM stall).
        @pl.when(tb == 0)
        def _():
            h_s[...] = h0_ref[...]
            c_s[...] = c0_ref[...]

        whh = whh_ref[...]                            # (H, 4H), resident per direction

        def run_block(reverse):
            # Natural (un-reversed) time-block index of this grid step.
            blk = (nT - 1 - tb) if reverse else tb
            h = h_s[...]
            c = c_s[...]
            # Fully unrolled, statically indexed time loop: `ti` is a Python int
            # per unrolled step -> static-offset gx loads / y stores.
            for tt in range(T_blk):
                ti = (T_blk - 1 - tt) if reverse else tt
                gates = gx_ref[ti].astype(jnp.float32) + jnp.dot(
                    h.astype(whh.dtype), whh, preferred_element_type=jnp.float32)
                i_g = jax.nn.sigmoid(gates[:, 0 * H:1 * H])
                f_g = jax.nn.sigmoid(gates[:, 1 * H:2 * H])
                g_g = jnp.tanh(gates[:, 2 * H:3 * H])
                o_g = jax.nn.sigmoid(gates[:, 3 * H:4 * H])
                c_new = f_g * c + i_g * g_g
                h_new = o_g * jnp.tanh(c_new)
                # Per-timestep output (padded rows are garbage; wrapper trims).
                y_ref[ti] = h_new.astype(y_ref.dtype)
                if ti < last_blk_valid:
                    # This step index is real in EVERY block: no mask at all.
                    h, c = h_new, c_new
                else:
                    # Only the last natural block can contain this padded step.
                    valid = blk != (nT - 1)
                    h = jnp.where(valid, h_new, h)
                    c = jnp.where(valid, c_new, c)
            h_s[...] = h
            c_s[...] = c

            # Final hidden/cell state: written once, at the last time block only.
            @pl.when(tb == nT - 1)
            def _():
                hN_ref[...] = h
                cN_ref[...] = c

        if num_dirs == 1:
            run_block(False)
        else:
            @pl.when(d == 0)
            def _():
                run_block(False)

            @pl.when(d == 1)
            def _():
                run_block(True)

    return kernel


def lstm_layer_bidir(x, w_ih_t, w_hh_t, b_s, h0_s, c0_s, *,
                     t_block=32, gate_dtype=jnp.float32):
    """One LSTM layer, all directions fused into a single pallas_call.

    x:       (T, B, Hin)
    w_ih_t:  (D, Hin, 4H)  pre-transposed input->hidden weights
    w_hh_t:  (D, H,  4H)   pre-transposed hidden->hidden weights
    b_s:     (D, 4H)       b_ih + b_hh
    h0_s, c0_s: (D, B, H)
    Returns y (D, T, B, H), hN (D, B, H), cN (D, B, H).
    """
    T, B, Hin = x.shape
    D, _, H4 = w_ih_t.shape
    H = H4 // 4

    T_blk = min(t_block, T)
    nT = -(-T // T_blk)
    T_pad = nT * T_blk

    # Pad the cheap Hin-wide x BEFORE the 4H-wide einsum (not the gx tensor).
    if T_pad != T:
        x = jnp.pad(x, ((0, T_pad - T), (0, 0), (0, 0)))

    # Hoisted input-to-hidden matmul (+ bias) over all timesteps at once.
    gx = (jnp.einsum('tbi,dig->dtbg', x, w_ih_t,
                     preferred_element_type=jnp.float32)
          + b_s[:, None, None, :]).astype(gate_dtype)
    whh = w_hh_t.astype(gate_dtype)

    kernel = _make_lstm_kernel(T, T_blk, nT, H, D)

    # Time-block index map: forward reads blocks 0..nT-1, backward nT-1..0.
    def t_map(d, t):
        return (d, d * (nT - 1) + (1 - 2 * d) * t, 0, 0)

    def dir_map(d, t):            # constant over the time axis -> prefetched once/dir
        return (d, 0, 0)

    grid_spec = pltpu.PrefetchScalarGridSpec(
        num_scalar_prefetch=0,
        grid=(D, nT),
        in_specs=[
            pl.BlockSpec((None, T_blk, B, 4 * H), t_map),     # gates_x block
            pl.BlockSpec((None, H, 4 * H), dir_map),          # W_hh^T (per direction)
            pl.BlockSpec((None, B, H), dir_map),              # h0
            pl.BlockSpec((None, B, H), dir_map),              # c0
        ],
        out_specs=[
            pl.BlockSpec((None, T_blk, B, H), t_map),         # y block
            pl.BlockSpec((None, B, H), dir_map),              # h_n
            pl.BlockSpec((None, B, H), dir_map),              # c_n
        ],
        scratch_shapes=[
            pltpu.VMEM((B, H), jnp.float32),                  # h state
            pltpu.VMEM((B, H), jnp.float32),                  # c state
        ],
    )

    # Explicit VMEM budget (keeps v7x's 64 MiB per-TC physical limit honest).
    item = jnp.dtype(gate_dtype).itemsize
    est = (2 * T_blk * B * 4 * H * item        # gx, double-buffered
           + 2 * T_blk * B * H * item          # y, double-buffered
           + 2 * H * 4 * H * item              # W_hh^T, double-buffered
           + 4 * 2 * B * H * 4                 # h0/c0 in + hN/cN out blocks
           + 2 * B * H * 4)                    # h/c scratch
    vmem_limit = int(min(max(2 * est, 32 << 20), 64 << 20))

    y, hN, cN = pl.pallas_call(
        kernel,
        out_shape=(
            jax.ShapeDtypeStruct((D, T_pad, B, H), gate_dtype),
            jax.ShapeDtypeStruct((D, B, H), jnp.float32),
            jax.ShapeDtypeStruct((D, B, H), jnp.float32),
        ),
        grid_spec=grid_spec,
        compiler_params=pltpu.CompilerParams(
            dimension_semantics=("parallel", "arbitrary"),
            vmem_limit_bytes=vmem_limit),
    )(gx, whh, h0_s, c0_s)
    return y[:, :T], hN, cN


# ----------------------------------------------------------------------------
# Full EncoderRNNManual forward (embedding -> dropout(eval) -> stacked biLSTM).
# nn.Linear `fc` is defined but unused in the reference forward, so it is omitted.
# ----------------------------------------------------------------------------
def init_params(key, input_size, hidden_size, layers, directions):
    H = hidden_size
    scale = 1.0 / jnp.sqrt(jnp.float32(H))
    keys = jax.random.split(key, 1 + 4 * layers * directions)
    params = {"embedding": jax.random.normal(keys[0], (input_size, H), jnp.float32)}
    lstm = []
    k = 1
    for l in range(layers):
        in_dim = H if l == 0 else H * directions
        w_ih_l, w_hh_l, b_l = [], [], []
        for d in range(directions):
            w_ih = jax.random.uniform(keys[k], (4 * H, in_dim), jnp.float32, -scale, scale); k += 1
            w_hh = jax.random.uniform(keys[k], (4 * H, H), jnp.float32, -scale, scale); k += 1
            b_ih = jax.random.uniform(keys[k], (4 * H,), jnp.float32, -scale, scale); k += 1
            b_hh = jax.random.uniform(keys[k], (4 * H,), jnp.float32, -scale, scale); k += 1
            # Pre-transpose once at init: the forward never pays an HBM transpose
            # pass and Pallas always sees the lane-friendly (..., 4H) layout.
            w_ih_l.append(w_ih.T)       # (in_dim, 4H)
            w_hh_l.append(w_hh.T)       # (H, 4H)
            b_l.append(b_ih + b_hh)
        lstm.append((jnp.stack(w_ih_l), jnp.stack(w_hh_l), jnp.stack(b_l)))
    params["lstm"] = tuple(lstm)
    return params


def encoder_forward(params, tokens, h0, c0, *, layers, directions,
                    t_block=32, gate_dtype=jnp.float32):
    # tokens: (T, B) int32 ; h0/c0: (layers*directions, B, H)
    # TODO(synk): nn.Dropout / inter-layer LSTM dropout treated as eval-mode identity.
    x = jnp.take(params["embedding"], tokens, axis=0)            # (T, B, H)
    h_finals, c_finals = [], []
    for l in range(layers):
        w_ih_t, w_hh_t, b_s = params["lstm"][l]
        h0_l = h0[l * directions:(l + 1) * directions]
        c0_l = c0[l * directions:(l + 1) * directions]
        y, hN, cN = lstm_layer_bidir(x, w_ih_t, w_hh_t, b_s, h0_l, c0_l,
                                     t_block=t_block, gate_dtype=gate_dtype)
        x = y[0] if directions == 1 else jnp.concatenate([y[0], y[1]], axis=-1)
        h_finals.append(hN)
        c_finals.append(cN)
    hiddens = x.astype(jnp.float32)                              # (T, B, H*D)
    h_n = jnp.concatenate(h_finals, axis=0)                      # (layers*D, B, H)
    c_n = jnp.concatenate(c_finals, axis=0)
    return hiddens, (h_n, c_n)


# ----------------------------------------------------------------------------
# Pure-JAX reference (lax.scan) for a correctness check of the kernel.
# ----------------------------------------------------------------------------
def _ref_lstm_layer_dir(x, w_ih_t, w_hh_t, b, h0, c0):
    H = h0.shape[-1]

    def step(carry, x_t):
        h, c = carry
        gates = x_t @ w_ih_t + h @ w_hh_t + b
        i = jax.nn.sigmoid(gates[:, 0 * H:1 * H])
        f = jax.nn.sigmoid(gates[:, 1 * H:2 * H])
        g = jnp.tanh(gates[:, 2 * H:3 * H])
        o = jax.nn.sigmoid(gates[:, 3 * H:4 * H])
        c = f * c + i * g
        h = o * jnp.tanh(c)
        return (h, c), h

    (hN, cN), ys = jax.lax.scan(step, (h0, c0), x)
    return ys, hN, cN


if __name__ == "__main__":
    VOCAB = 50        # input_size
    HIDDEN = 32       # hidden_size
    LAYERS = 2
    BIDIR = True
    DIRS = 2 if BIDIR else 1
    T, B = 10, 4      # T not a multiple of T_BLOCK -> exercises padding/masking
    T_BLOCK = 4       # multiple time blocks per direction -> exercises pipelining

    key = jax.random.PRNGKey(0)
    k_par, k_tok = jax.random.split(key)
    params = init_params(k_par, VOCAB, HIDDEN, LAYERS, DIRS)

    tokens = jax.random.randint(k_tok, (T, B), 0, VOCAB, jnp.int32)
    # create_init_hiddens equivalent
    h0 = jnp.zeros((LAYERS * DIRS, B, HIDDEN), jnp.float32)
    c0 = jnp.zeros((LAYERS * DIRS, B, HIDDEN), jnp.float32)

    fwd = functools.partial(encoder_forward, layers=LAYERS, directions=DIRS,
                            t_block=T_BLOCK)
    hiddens, (h_n, c_n) = jax.jit(fwd)(params, tokens, h0, c0)
    jax.block_until_ready((hiddens, h_n, c_n))

    # Cross-check the Pallas LSTM stack against the pure-JAX reference.
    x = jnp.take(params["embedding"], tokens, axis=0)
    rh, rc = [], []
    for l in range(LAYERS):
        w_ih_t, w_hh_t, b_s = params["lstm"][l]
        outs = []
        for d in range(DIRS):
            idx = l * DIRS + d
            xin = x if d == 0 else x[::-1]
            y, hN, cN = _ref_lstm_layer_dir(xin, w_ih_t[d], w_hh_t[d], b_s[d],
                                            h0[idx], c0[idx])
            if d == 1:
                y = y[::-1]
            outs.append(y); rh.append(hN); rc.append(cN)
        x = jnp.concatenate(outs, axis=-1)

    assert hiddens.shape == (T, B, HIDDEN * DIRS)
    assert h_n.shape == (LAYERS * DIRS, B, HIDDEN)
    assert c_n.shape == (LAYERS * DIRS, B, HIDDEN)
    assert jnp.allclose(hiddens, x, atol=2e-5, rtol=2e-5)
    assert jnp.allclose(h_n, jnp.stack(rh), atol=2e-5, rtol=2e-5)
    assert jnp.allclose(c_n, jnp.stack(rc), atol=2e-5, rtol=2e-5)
    print("KERNEL_OK")
</pallas_src>

<mosaic_0001>
module attributes {stable_mosaic.version = 11 : i64} {
  func.func @kernel(%arg0: i32, %arg1: i32, %arg2: memref<1x4x4x128xf32, #tpu.memory_space<vmem>>, %arg3: memref<1x32x128xf32, #tpu.memory_space<vmem>>, %arg4: memref<1x4x32xf32, #tpu.memory_space<vmem>>, %arg5: memref<1x4x32xf32, #tpu.memory_space<vmem>>, %arg6: memref<1x4x4x32xf32, #tpu.memory_space<vmem>>, %arg7: memref<1x4x32xf32, #tpu.memory_space<vmem>>, %arg8: memref<1x4x32xf32, #tpu.memory_space<vmem>>, %arg9: memref<4x32xf32, #tpu.memory_space<vmem>>, %arg10: memref<4x32xf32, #tpu.memory_space<vmem>>) attributes {dimension_semantics = [#tpu.dimension_semantics<parallel>, #tpu.dimension_semantics<arbitrary>], iteration_bounds = array<i64: 2, 3>, scalar_prefetch = 0 : i64, scratch_operands = 2 : i64, tpu.core_type = #tpu.core_type<tc>, window_params = [{transform_indices = @transform_0, window_bounds = array<i64: 1, 4, 4, 128>}, {transform_indices = @transform_1, window_bounds = array<i64: 1, 32, 128>}, {transform_indices = @transform_2, window_bounds = array<i64: 1, 4, 32>}, {transform_indices = @transform_3, window_bounds = array<i64: 1, 4, 32>}, {transform_indices = @transform_4, window_bounds = array<i64: 1, 4, 4, 32>}, {transform_indices = @transform_5, window_bounds = array<i64: 1, 4, 32>}, {transform_indices = @transform_6, window_bounds = array<i64: 1, 4, 32>}]} {
    %c0_i32 = arith.constant 0 : i32
    %0 = arith.cmpi eq, %arg1, %c0_i32 : i32
    %1 = arith.extui %0 : i1 to i32
    %c0_i32_0 = arith.constant 0 : i32
    %2 = arith.cmpi ne, %1, %c0_i32_0 : i32
    scf.if %2 {
      %c0_6 = arith.constant 0 : index
      %c0_7 = arith.constant 0 : index
      %c0_8 = arith.constant 0 : index
      %11 = vector.load %arg4[%c0_6, %c0_7, %c0_8] : memref<1x4x32xf32, #tpu.memory_space<vmem>>, vector<1x4x32xf32>
      %12 = vector.shape_cast %11 : vector<1x4x32xf32> to vector<4x32xf32>
      %c0_9 = arith.constant 0 : index
      %c0_10 = arith.constant 0 : index
      %13 = vector.load %arg9[%c0_9, %c0_10] : memref<4x32xf32, #tpu.memory_space<vmem>>, vector<4x32xf32>
      tpu.vector_store %arg9[%c0_9, %c0_10], %12 {strides = array<i32>} : memref<4x32xf32, #tpu.memory_space<vmem>>, vector<4x32xf32>,
      %c0_11 = arith.constant 0 : index
      %c0_12 = arith.constant 0 : index
      %c0_13 = arith.constant 0 : index
      %14 = vector.load %arg5[%c0_11, %c0_12, %c0_13] : memref<1x4x32xf32, #tpu.memory_space<vmem>>, vector<1x4x32xf32>
      %15 = vector.shape_cast %14 : vector<1x4x32xf32> to vector<4x32xf32>
      %c0_14 = arith.constant 0 : index
      %c0_15 = arith.constant 0 : index
      %16 = vector.load %arg10[%c0_14, %c0_15] : memref<4x32xf32, #tpu.memory_space<vmem>>, vector<4x32xf32>
      tpu.vector_store %arg10[%c0_14, %c0_15], %15 {strides = array<i32>} : memref<4x32xf32, #tpu.memory_space<vmem>>, vector<4x32xf32>,
    } else {
    }
    %c0 = arith.constant 0 : index
    %c0_1 = arith.constant 0 : index
    %c0_2 = arith.constant 0 : index
    %3 = vector.load %arg3[%c0, %c0_1, %c0_2] : memref<1x32x128xf32, #tpu.memory_space<vmem>>, vector<1x32x128xf32>
    %4 = vector.shape_cast %3 : vector<1x32x128xf32> to vector<32x128xf32>
    %c0_i32_3 = arith.constant 0 : i32
    %5 = arith.cmpi eq, %arg0, %c0_i32_3 : i32
    %6 = arith.extui %5 : i1 to i32
    %c0_i32_4 = arith.constant 0 : i32
    %7 = arith.cmpi ne, %6, %c0_i32_4 : i32
    scf.if %7 {
      %c0_6 = arith.constant 0 : index
      %c0_7 = arith.constant 0 : index
      %11 = vector.load %arg9[%c0_6, %c0_7] : memref<4x32xf32, #tpu.memory_space<vmem>>, vector<4x32xf32>
      %c0_8 = arith.constant 0 : index
      %c0_9 = arith.constant 0 : index
      %12 = vector.load %arg10[%c0_8, %c0_9] : memref<4x32xf32, #tpu.memory_space<vmem>>, vector<4x32xf32>
      %c0_10 = arith.constant 0 : index
      %c0_11 = arith.constant 0 : index
      %c0_12 = arith.constant 0 : index
      %c0_13 = arith.constant 0 : index
      %13 = vector.load %arg2[%c0_10, %c0_11, %c0_12, %c0_13] : memref<1x4x4x128xf32, #tpu.memory_space<vmem>>, vector<1x1x4x128xf32>
      %14 = vector.shape_cast %13 : vector<1x1x4x128xf32> to vector<4x128xf32>
      %cst = arith.constant dense<0.000000e+00> : vector<4x128xf32>
      %15 = tpu.matmul %11, %4, %cst {dimension_numbers = #tpu.dot_dimension_numbers<[1], [0], [0], [1], [0, 0, 1, 1], [], []>} : vector<4x32xf32>, vector<32x128xf32>, vector<4x128xf32> -> vector<4x128xf32>
      %16 = arith.addf %14, %15 : vector<4x128xf32>
      %17 = vector.extract_strided_slice %16 {offsets = [0, 0], sizes = [4, 32], strides = [1, 1]} : vector<4x128xf32> to vector<4x32xf32>
      %18 = arith.negf %17 : vector<4x32xf32>
      %19 = math.exp %18 : vector<4x32xf32>
      %cst_14 = arith.constant 1.000000e+00 : f32
      %20 = vector.broadcast %cst_14 : f32 to vector<4x32xf32>
      %21 = arith.addf %20, %19 : vector<4x32xf32>
      %22 = arith.divf %20, %21 : vector<4x32xf32>
      %23 = vector.extract_strided_slice %16 {offsets = [0, 32], sizes = [4, 32], strides = [1, 1]} : vector<4x128xf32> to vector<4x32xf32>
      %24 = arith.negf %23 : vector<4x32xf32>
      %25 = math.exp %24 : vector<4x32xf32>
      %cst_15 = arith.constant 1.000000e+00 : f32
      %26 = vector.broadcast %cst_15 : f32 to vector<4x32xf32>
      %27 = arith.addf %26, %25 : vector<4x32xf32>
      %28 = arith.divf %26, %27 : vector<4x32xf32>
      %29 = vector.extract_strided_slice %16 {offsets = [0, 64], sizes = [4, 32], strides = [1, 1]} : vector<4x128xf32> to vector<4x32xf32>
      %30 = math.tanh %29 : vector<4x32xf32>
      %31 = vector.extract_strided_slice %16 {offsets = [0, 96], sizes = [4, 32], strides = [1, 1]} : vector<4x128xf32> to vector<4x32xf32>
      %32 = arith.negf %31 : vector<4x32xf32>
      %33 = math.exp %32 : vector<4x32xf32>
      %cst_16 = arith.constant 1.000000e+00 : f32
      %34 = vector.broadcast %cst_16 : f32 to vector<4x32xf32>
      %35 = arith.addf %34, %33 : vector<4x32xf32>
      %36 = arith.divf %34, %35 : vector<4x32xf32>
      %37 = arith.mulf %28, %12 : vector<4x32xf32>
      %38 = arith.mulf %22, %30 : vector<4x32xf32>
      %39 = arith.addf %37, %38 : vector<4x32xf32>
      %40 = math.tanh %39 : vector<4x32xf32>
      %41 = arith.mulf %36, %40 : vector<4x32xf32>
      %c0_17 = arith.constant 0 : index
      %c0_18 = arith.constant 0 : index
      %c0_19 = arith.constant 0 : index
      %c0_20 = arith.constant 0 : index
      %42 = vector.load %arg6[%c0_17, %c0_18, %c0_19, %c0_20] : memref<1x4x4x32xf32, #tpu.memory_space<vmem>>, vector<1x1x4x32xf32>
      %43 = vector.shape_cast %42 : vector<1x1x4x32xf32> to vector<4x32xf32>
      %44 = vector.shape_cast %41 : vector<4x32xf32> to vector<1x1x4x32xf32>
      tpu.vector_store %arg6[%c0_17, %c0_18, %c0_19, %c0_20], %44 {strides = array<i32>} : memref<1x4x4x32xf32, #tpu.memory_space<vmem>>, vector<1x1x4x32xf32>,
      %c0_21 = arith.constant 0 : index
      %c1 = arith.constant 1 : index
      %c0_22 = arith.constant 0 : index
      %c0_23 = arith.constant 0 : index
      %45 = vector.load %arg2[%c0_21, %c1, %c0_22, %c0_23] : memref<1x4x4x128xf32, #tpu.memory_space<vmem>>, vector<1x1x4x128xf32>
      %46 = vector.shape_cast %45 : vector<1x1x4x128xf32> to vector<4x128xf32>
      %cst_24 = arith.constant dense<0.000000e+00> : vector<4x128xf32>
      %47 = tpu.matmul %41, %4, %cst_24 {dimension_numbers = #tpu.dot_dimension_numbers<[1], [0], [0], [1], [0, 0, 1, 1], [], []>} : vector<4x32xf32>, vector<32x128xf32>, vector<4x128xf32> -> vector<4x128xf32>
      %48 = arith.addf %46, %47 : vector<4x128xf32>
      %49 = vector.extract_strided_slice %48 {offsets = [0, 0], sizes = [4, 32], strides = [1, 1]} : vector<4x128xf32> to vector<4x32xf32>
      %50 = arith.negf %49 : vector<4x32xf32>
      %51 = math.exp %50 : vector<4x32xf32>
      %cst_25 = arith.constant 1.000000e+00 : f32
      %52 = vector.broadcast %cst_25 : f32 to vector<4x32xf32>
      %53 = arith.addf %52, %51 : vector<4x32xf32>
      %54 = arith.divf %52, %53 : vector<4x32xf32>
      %55 = vector.extract_strided_slice %48 {offsets = [0, 32], sizes = [4, 32], strides = [1, 1]} : vector<4x128xf32> to vector<4x32xf32>
      %56 = arith.negf %55 : vector<4x32xf32>
      %57 = math.exp %56 : vector<4x32xf32>
      %cst_26 = arith.constant 1.000000e+00 : f32
      %58 = vector.broadcast %cst_26 : f32 to vector<4x32xf32>
      %59 = arith.addf %58, %57 : vector<4x32xf32>
      %60 = arith.divf %58, %59 : vector<4x32xf32>
      %61 = vector.extract_strided_slice %48 {offsets = [0, 64], sizes = [4, 32], strides = [1, 1]} : vector<4x128xf32> to vector<4x32xf32>
      %62 = math.tanh %61 : vector<4x32xf32>
      %63 = vector.extract_strided_slice %48 {offsets = [0, 96], sizes = [4, 32], strides = [1, 1]} : vector<4x128xf32> to vector<4x32xf32>
      %64 = arith.negf %63 : vector<4x32xf32>
      %65 = math.exp %64 : vector<4x32xf32>
      %cst_27 = arith.constant 1.000000e+00 : f32
      %66 = vector.broadcast %cst_27 : f32 to vector<4x32xf32>
      %67 = arith.addf %66, %65 : vector<4x32xf32>
      %68 = arith.divf %66, %67 : vector<4x32xf32>
      %69 = arith.mulf %60, %39 : vector<4x32xf32>
      %70 = arith.mulf %54, %62 : vector<4x32xf32>
      %71 = arith.addf %69, %70 : vector<4x32xf32>
      %72 = math.tanh %71 : vector<4x32xf32>
      %73 = arith.mulf %68, %72 : vector<4x32xf32>
      %c0_28 = arith.constant 0 : index
      %c1_29 = arith.constant 1 : index
      %c0_30 = arith.constant 0 : index
      %c0_31 = arith.constant 0 : index
      %74 = vector.load %arg6[%c0_28, %c1_29, %c0_30, %c0_31] : memref<1x4x4x32xf32, #tpu.memory_space<vmem>>, vector<1x1x4x32xf32>
      %75 = vector.shape_cast %74 : vector<1x1x4x32xf32> to vector<4x32xf32>
      %76 = vector.shape_cast %73 : vector<4x32xf32> to vector<1x1x4x32xf32>
      tpu.vector_store %arg6[%c0_28, %c1_29, %c0_30, %c0_31], %76 {strides = array<i32>} : memref<1x4x4x32xf32, #tpu.memory_space<vmem>>, vector<1x1x4x32xf32>,
      %c0_32 = arith.constant 0 : index
      %c2 = arith.constant 2 : index
      %c0_33 = arith.constant 0 : index
      %c0_34 = arith.constant 0 : index
      %77 = vector.load %arg2[%c0_32, %c2, %c0_33, %c0_34] : memref<1x4x4x128xf32, #tpu.memory_space<vmem>>, vector<1x1x4x128xf32>
      %78 = vector.shape_cast %77 : vector<1x1x4x128xf32> to vector<4x128xf32>
      %cst_35 = arith.constant dense<0.000000e+00> : vector<4x128xf32>
      %79 = tpu.matmul %73, %4, %cst_35 {dimension_numbers = #tpu.dot_dimension_numbers<[1], [0], [0], [1], [0, 0, 1, 1], [], []>} : vector<4x32xf32>, vector<32x128xf32>, vector<4x128xf32> -> vector<4x128xf32>
      %80 = arith.addf %78, %79 : vector<4x128xf32>
      %81 = vector.extract_strided_slice %80 {offsets = [0, 0], sizes = [4, 32], strides = [1, 1]} : vector<4x128xf32> to vector<4x32xf32>
      %82 = arith.negf %81 : vector<4x32xf32>
      %83 = math.exp %82 : vector<4x32xf32>
      %cst_36 = arith.constant 1.000000e+00 : f32
      %84 = vector.broadcast %cst_36 : f32 to vector<4x32xf32>
      %85 = arith.addf %84, %83 : vector<4x32xf32>
      %86 = arith.divf %84, %85 : vector<4x32xf32>
      %87 = vector.extract_strided_slice %80 {offsets = [0, 32], sizes = [4, 32], strides = [1, 1]} : vector<4x128xf32> to vector<4x32xf32>
      %88 = arith.negf %87 : vector<4x32xf32>
      %89 = math.exp %88 : vector<4x32xf32>
      %cst_37 = arith.constant 1.000000e+00 : f32
      %90 = vector.broadcast %cst_37 : f32 to vector<4x32xf32>
      %91 = arith.addf %90, %89 : vector<4x32xf32>
      %92 = arith.divf %90, %91 : vector<4x32xf32>
      %93 = vector.extract_strided_slice %80 {offsets = [0, 64], sizes = [4, 32], strides = [1, 1]} : vector<4x128xf32> to vector<4x32xf32>
      %94 = math.tanh %93 : vector<4x32xf32>
      %95 = vector.extract_strided_slice %80 {offsets = [0, 96], sizes = [4, 32], strides = [1, 1]} : vector<4x128xf32> to vector<4x32xf32>
      %96 = arith.negf %95 : vector<4x32xf32>
      %97 = math.exp %96 : vector<4x32xf32>
      %cst_38 = arith.constant 1.000000e+00 : f32
      %98 = vector.broadcast %cst_38 : f32 to vector<4x32xf32>
      %99 = arith.addf %98, %97 : vector<4x32xf32>
      %100 = arith.divf %98, %99 : vector<4x32xf32>
      %101 = arith.mulf %92, %71 : vector<4x32xf32>
      %102 = arith.mulf %86, %94 : vector<4x32xf32>
      %103 = arith.addf %101, %102 : vector<4x32xf32>
      %104 = math.tanh %103 : vector<4x32xf32>
      %105 = arith.mulf %100, %104 : vector<4x32xf32>
      %c0_39 = arith.constant 0 : index
      %c2_40 = arith.constant 2 : index
      %c0_41 = arith.constant 0 : index
      %c0_42 = arith.constant 0 : index
      %106 = vector.load %arg6[%c0_39, %c2_40, %c0_41, %c0_42] : memref<1x4x4x32xf32, #tpu.memory_space<vmem>>, vector<1x1x4x32xf32>
      %107 = vector.shape_cast %106 : vector<1x1x4x32xf32> to vector<4x32xf32>
      %108 = vector.shape_cast %105 : vector<4x32xf32> to vector<1x1x4x32xf32>
      tpu.vector_store %arg6[%c0_39, %c2_40, %c0_41, %c0_42], %108 {strides = array<i32>} : memref<1x4x4x32xf32, #tpu.memory_space<vmem>>, vector<1x1x4x32xf32>,
      %c2_i32 = arith.constant 2 : i32
      %109 = arith.cmpi ne, %arg1, %c2_i32 : i32
      %110 = arith.select %109, %105, %73 : vector<4x32xf32>
      %111 = arith.select %109, %103, %71 : vector<4x32xf32>
      %c0_43 = arith.constant 0 : index
      %c3 = arith.constant 3 : index
      %c0_44 = arith.constant 0 : index
      %c0_45 = arith.constant 0 : index
      %112 = vector.load %arg2[%c0_43, %c3, %c0_44, %c0_45] : memref<1x4x4x128xf32, #tpu.memory_space<vmem>>, vector<1x1x4x128xf32>
      %113 = vector.shape_cast %112 : vector<1x1x4x128xf32> to vector<4x128xf32>
      %cst_46 = arith.constant dense<0.000000e+00> : vector<4x128xf32>
      %114 = tpu.matmul %110, %4, %cst_46 {dimension_numbers = #tpu.dot_dimension_numbers<[1], [0], [0], [1], [0, 0, 1, 1], [], []>} : vector<4x32xf32>, vector<32x128xf32>, vector<4x128xf32> -> vector<4x128xf32>
      %115 = arith.addf %113, %114 : vector<4x128xf32>
      %116 = vector.extract_strided_slice %115 {offsets = [0, 0], sizes = [4, 32], strides = [1, 1]} : vector<4x128xf32> to vector<4x32xf32>
      %117 = arith.negf %116 : vector<4x32xf32>
      %118 = math.exp %117 : vector<4x32xf32>
      %cst_47 = arith.constant 1.000000e+00 : f32
      %119 = vector.broadcast %cst_47 : f32 to vector<4x32xf32>
      %120 = arith.addf %119, %118 : vector<4x32xf32>
      %121 = arith.divf %119, %120 : vector<4x32xf32>
      %122 = vector.extract_strided_slice %115 {offsets = [0, 32], sizes = [4, 32], strides = [1, 1]} : vector<4x128xf32> to vector<4x32xf32>
      %123 = arith.negf %122 : vector<4x32xf32>
      %124 = math.exp %123 : vector<4x32xf32>
      %cst_48 = arith.constant 1.000000e+00 : f32
      %125 = vector.broadcast %cst_48 : f32 to vector<4x32xf32>
      %126 = arith.addf %125, %124 : vector<4x32xf32>
      %127 = arith.divf %125, %126 : vector<4x32xf32>
      %128 = vector.extract_strided_slice %115 {offsets = [0, 64], sizes = [4, 32], strides = [1, 1]} : vector<4x128xf32> to vector<4x32xf32>
      %129 = math.tanh %128 : vector<4x32xf32>
      %130 = vector.extract_strided_slice %115 {offsets = [0, 96], sizes = [4, 32], strides = [1, 1]} : vector<4x128xf32> to vector<4x32xf32>
      %131 = arith.negf %130 : vector<4x32xf32>
      %132 = math.exp %131 : vector<4x32xf32>
      %cst_49 = arith.constant 1.000000e+00 : f32
      %133 = vector.broadcast %cst_49 : f32 to vector<4x32xf32>
      %134 = arith.addf %133, %132 : vector<4x32xf32>
      %135 = arith.divf %133, %134 : vector<4x32xf32>
      %136 = arith.mulf %127, %111 : vector<4x32xf32>
      %137 = arith.mulf %121, %129 : vector<4x32xf32>
      %138 = arith.addf %136, %137 : vector<4x32xf32>
      %139 = math.tanh %138 : vector<4x32xf32>
      %140 = arith.mulf %135, %139 : vector<4x32xf32>
      %c0_50 = arith.constant 0 : index
      %c3_51 = arith.constant 3 : index
      %c0_52 = arith.constant 0 : index
      %c0_53 = arith.constant 0 : index
      %141 = vector.load %arg6[%c0_50, %c3_51, %c0_52, %c0_53] : memref<1x4x4x32xf32, #tpu.memory_space<vmem>>, vector<1x1x4x32xf32>
      %142 = vector.shape_cast %141 : vector<1x1x4x32xf32> to vector<4x32xf32>
      %143 = vector.shape_cast %140 : vector<4x32xf32> to vector<1x1x4x32xf32>
      tpu.vector_store %arg6[%c0_50, %c3_51, %c0_52, %c0_53], %143 {strides = array<i32>} : memref<1x4x4x32xf32, #tpu.memory_space<vmem>>, vector<1x1x4x32xf32>,
      %c2_i32_54 = arith.constant 2 : i32
      %144 = arith.cmpi ne, %arg1, %c2_i32_54 : i32
      %145 = arith.select %144, %140, %110 : vector<4x32xf32>
      %146 = arith.select %144, %138, %111 : vector<4x32xf32>
      %c0_55 = arith.constant 0 : index
      %c0_56 = arith.constant 0 : index
      %147 = vector.load %arg9[%c0_55, %c0_56] : memref<4x32xf32, #tpu.memory_space<vmem>>, vector<4x32xf32>
      tpu.vector_store %arg9[%c0_55, %c0_56], %145 {strides = array<i32>} : memref<4x32xf32, #tpu.memory_space<vmem>>, vector<4x32xf32>,
      %c0_57 = arith.constant 0 : index
      %c0_58 = arith.constant 0 : index
      %148 = vector.load %arg10[%c0_57, %c0_58] : memref<4x32xf32, #tpu.memory_space<vmem>>, vector<4x32xf32>
      tpu.vector_store %arg10[%c0_57, %c0_58], %146 {strides = array<i32>} : memref<4x32xf32, #tpu.memory_space<vmem>>, vector<4x32xf32>,
      %c2_i32_59 = arith.constant 2 : i32
      %149 = arith.cmpi eq, %arg1, %c2_i32_59 : i32
      %150 = arith.extui %149 : i1 to i32
      %c0_i32_60 = arith.constant 0 : i32
      %151 = arith.cmpi ne, %150, %c0_i32_60 : i32
      scf.if %151 {
        %c0_61 = arith.constant 0 : index
        %c0_62 = arith.constant 0 : index
        %c0_63 = arith.constant 0 : index
        %152 = vector.load %arg7[%c0_61, %c0_62, %c0_63] : memref<1x4x32xf32, #tpu.memory_space<vmem>>, vector<1x4x32xf32>
        %153 = vector.shape_cast %152 : vector<1x4x32xf32> to vector<4x32xf32>
        %154 = vector.shape_cast %145 : vector<4x32xf32> to vector<1x4x32xf32>
        tpu.vector_store %arg7[%c0_61, %c0_62, %c0_63], %154 {strides = array<i32>} : memref<1x4x32xf32, #tpu.memory_space<vmem>>, vector<1x4x32xf32>,
        %c0_64 = arith.constant 0 : index
        %c0_65 = arith.constant 0 : index
        %c0_66 = arith.constant 0 : index
        %155 = vector.load %arg8[%c0_64, %c0_65, %c0_66] : memref<1x4x32xf32, #tpu.memory_space<vmem>>, vector<1x4x32xf32>
        %156 = vector.shape_cast %155 : vector<1x4x32xf32> to vector<4x32xf32>
        %157 = vector.shape_cast %146 : vector<4x32xf32> to vector<1x4x32xf32>
        tpu.vector_store %arg8[%c0_64, %c0_65, %c0_66], %157 {strides = array<i32>} : memref<1x4x32xf32, #tpu.memory_space<vmem>>, vector<1x4x32xf32>,
      } else {
      }
    } else {
    }
    %c1_i32 = arith.constant 1 : i32
    %8 = arith.cmpi eq, %arg0, %c1_i32 : i32
    %9 = arith.extui %8 : i1 to i32
    %c0_i32_5 = arith.constant 0 : i32
    %10 = arith.cmpi ne, %9, %c0_i32_5 : i32
    scf.if %10 {
      %c2_i32 = arith.constant 2 : i32
      %11 = arith.subi %c2_i32, %arg1 : i32
      %c0_6 = arith.constant 0 : index
      %c0_7 = arith.constant 0 : index
      %12 = vector.load %arg9[%c0_6, %c0_7] : memref<4x32xf32, #tpu.memory_space<vmem>>, vector<4x32xf32>
      %c0_8 = arith.constant 0 : index
      %c0_9 = arith.constant 0 : index
      %13 = vector.load %arg10[%c0_8, %c0_9] : memref<4x32xf32, #tpu.memory_space<vmem>>, vector<4x32xf32>
      %c0_10 = arith.constant 0 : index
      %c3 = arith.constant 3 : index
      %c0_11 = arith.constant 0 : index
      %c0_12 = arith.constant 0 : index
      %14 = vector.load %arg2[%c0_10, %c3, %c0_11, %c0_12] : memref<1x4x4x128xf32, #tpu.memory_space<vmem>>, vector<1x1x4x128xf32>
      %15 = vector.shape_cast %14 : vector<1x1x4x128xf32> to vector<4x128xf32>
      %cst = arith.constant dense<0.000000e+00> : vector<4x128xf32>
      %16 = tpu.matmul %12, %4, %cst {dimension_numbers = #tpu.dot_dimension_numbers<[1], [0], [0], [1], [0, 0, 1, 1], [], []>} : vector<4x32xf32>, vector<32x128xf32>, vector<4x128xf32> -> vector<4x128xf32>
      %17 = arith.addf %15, %16 : vector<4x128xf32>
      %18 = vector.extract_strided_slice %17 {offsets = [0, 0], sizes = [4, 32], strides = [1, 1]} : vector<4x128xf32> to vector<4x32xf32>
      %19 = arith.negf %18 : vector<4x32xf32>
      %20 = math.exp %19 : vector<4x32xf32>
      %cst_13 = arith.constant 1.000000e+00 : f32
      %21 = vector.broadcast %cst_13 : f32 to vector<4x32xf32>
      %22 = arith.addf %21, %20 : vector<4x32xf32>
      %23 = arith.divf %21, %22 : vector<4x32xf32>
      %24 = vector.extract_strided_slice %17 {offsets = [0, 32], sizes = [4, 32], strides = [1, 1]} : vector<4x128xf32> to vector<4x32xf32>
      %25 = arith.negf %24 : vector<4x32xf32>
      %26 = math.exp %25 : vector<4x32xf32>
      %cst_14 = arith.constant 1.000000e+00 : f32
      %27 = vector.broadcast %cst_14 : f32 to vector<4x32xf32>
      %28 = arith.addf %27, %26 : vector<4x32xf32>
      %29 = arith.divf %27, %28 : vector<4x32xf32>
      %30 = vector.extract_strided_slice %17 {offsets = [0, 64], sizes = [4, 32], strides = [1, 1]} : vector<4x128xf32> to vector<4x32xf32>
      %31 = math.tanh %30 : vector<4x32xf32>
      %32 = vector.extract_strided_slice %17 {offsets = [0, 96], sizes = [4, 32], strides = [1, 1]} : vector<4x128xf32> to vector<4x32xf32>
      %33 = arith.negf %32 : vector<4x32xf32>
      %34 = math.exp %33 : vector<4x32xf32>
      %cst_15 = arith.constant 1.000000e+00 : f32
      %35 = vector.broadcast %cst_15 : f32 to vector<4x32xf32>
      %36 = arith.addf %35, %34 : vector<4x32xf32>
      %37 = arith.divf %35, %36 : vector<4x32xf32>
      %38 = arith.mulf %29, %13 : vector<4x32xf32>
      %39 = arith.mulf %23, %31 : vector<4x32xf32>
      %40 = arith.addf %38, %39 : vector<4x32xf32>
      %41 = math.tanh %40 : vector<4x32xf32>
      %42 = arith.mulf %37, %41 : vector<4x32xf32>
      %c0_16 = arith.constant 0 : index
      %c3_17 = arith.constant 3 : index
      %c0_18 = arith.constant 0 : index
      %c0_19 = arith.constant 0 : index
      %43 = vector.load %arg6[%c0_16, %c3_17, %c0_18, %c0_19] : memref<1x4x4x32xf32, #tpu.memory_space<vmem>>, vector<1x1x4x32xf32>
      %44 = vector.shape_cast %43 : vector<1x1x4x32xf32> to vector<4x32xf32>
      %45 = vector.shape_cast %42 : vector<4x32xf32> to vector<1x1x4x32xf32>
      tpu.vector_store %arg6[%c0_16, %c3_17, %c0_18, %c0_19], %45 {strides = array<i32>} : memref<1x4x4x32xf32, #tpu.memory_space<vmem>>, vector<1x1x4x32xf32>,
      %c2_i32_20 = arith.constant 2 : i32
      %46 = arith.cmpi ne, %11, %c2_i32_20 : i32
      %47 = arith.select %46, %42, %12 : vector<4x32xf32>
      %48 = arith.select %46, %40, %13 : vector<4x32xf32>
      %c0_21 = arith.constant 0 : index
      %c2 = arith.constant 2 : index
      %c0_22 = arith.constant 0 : index
      %c0_23 = arith.constant 0 : index
      %49 = vector.load %arg2[%c0_21, %c2, %c0_22, %c0_23] : memref<1x4x4x128xf32, #tpu.memory_space<vmem>>, vector<1x1x4x128xf32>
      %50 = vector.shape_cast %49 : vector<1x1x4x128xf32> to vector<4x128xf32>
      %cst_24 = arith.constant dense<0.000000e+00> : vector<4x128xf32>
      %51 = tpu.matmul %47, %4, %cst_24 {dimension_numbers = #tpu.dot_dimension_numbers<[1], [0], [0], [1], [0, 0, 1, 1], [], []>} : vector<4x32xf32>, vector<32x128xf32>, vector<4x128xf32> -> vector<4x128xf32>
      %52 = arith.addf %50, %51 : vector<4x128xf32>
      %53 = vector.extract_strided_slice %52 {offsets = [0, 0], sizes = [4, 32], strides = [1, 1]} : vector<4x128xf32> to vector<4x32xf32>
      %54 = arith.negf %53 : vector<4x32xf32>
      %55 = math.exp %54 : vector<4x32xf32>
      %cst_25 = arith.constant 1.000000e+00 : f32
      %56 = vector.broadcast %cst_25 : f32 to vector<4x32xf32>
      %57 = arith.addf %56, %55 : vector<4x32xf32>
      %58 = arith.divf %56, %57 : vector<4x32xf32>
      %59 = vector.extract_strided_slice %52 {offsets = [0, 32], sizes = [4, 32], strides = [1, 1]} : vector<4x128xf32> to vector<4x32xf32>
      %60 = arith.negf %59 : vector<4x32xf32>
      %61 = math.exp %60 : vector<4x32xf32>
      %cst_26 = arith.constant 1.000000e+00 : f32
      %62 = vector.broadcast %cst_26 : f32 to vector<4x32xf32>
      %63 = arith.addf %62, %61 : vector<4x32xf32>
      %64 = arith.divf %62, %63 : vector<4x32xf32>
      %65 = vector.extract_strided_slice %52 {offsets = [0, 64], sizes = [4, 32], strides = [1, 1]} : vector<4x128xf32> to vector<4x32xf32>
      %66 = math.tanh %65 : vector<4x32xf32>
      %67 = vector.extract_strided_slice %52 {offsets = [0, 96], sizes = [4, 32], strides = [1, 1]} : vector<4x128xf32> to vector<4x32xf32>
      %68 = arith.negf %67 : vector<4x32xf32>
      %69 = math.exp %68 : vector<4x32xf32>
      %cst_27 = arith.constant 1.000000e+00 : f32
      %70 = vector.broadcast %cst_27 : f32 to vector<4x32xf32>
      %71 = arith.addf %70, %69 : vector<4x32xf32>
      %72 = arith.divf %70, %71 : vector<4x32xf32>
      %73 = arith.mulf %64, %48 : vector<4x32xf32>
      %74 = arith.mulf %58, %66 : vector<4x32xf32>
      %75 = arith.addf %73, %74 : vector<4x32xf32>
      %76 = math.tanh %75 : vector<4x32xf32>
      %77 = arith.mulf %72, %76 : vector<4x32xf32>
      %c0_28 = arith.constant 0 : index
      %c2_29 = arith.constant 2 : index
      %c0_30 = arith.constant 0 : index
      %c0_31 = arith.constant 0 : index
      %78 = vector.load %arg6[%c0_28, %c2_29, %c0_30, %c0_31] : memref<1x4x4x32xf32, #tpu.memory_space<vmem>>, vector<1x1x4x32xf32>
      %79 = vector.shape_cast %78 : vector<1x1x4x32xf32> to vector<4x32xf32>
      %80 = vector.shape_cast %77 : vector<4x32xf32> to vector<1x1x4x32xf32>
      tpu.vector_store %arg6[%c0_28, %c2_29, %c0_30, %c0_31], %80 {strides = array<i32>} : memref<1x4x4x32xf32, #tpu.memory_space<vmem>>, vector<1x1x4x32xf32>,
      %c2_i32_32 = arith.constant 2 : i32
      %81 = arith.cmpi ne, %11, %c2_i32_32 : i32
      %82 = arith.select %81, %77, %47 : vector<4x32xf32>
      %83 = arith.select %81, %75, %48 : vector<4x32xf32>
      %c0_33 = arith.constant 0 : index
      %c1 = arith.constant 1 : index
      %c0_34 = arith.constant 0 : index
      %c0_35 = arith.constant 0 : index
      %84 = vector.load %arg2[%c0_33, %c1, %c0_34, %c0_35] : memref<1x4x4x128xf32, #tpu.memory_space<vmem>>, vector<1x1x4x128xf32>
      %85 = vector.shape_cast %84 : vector<1x1x4x128xf32> to vector<4x128xf32>
      %cst_36 = arith.constant dense<0.000000e+00> : vector<4x128xf32>
      %86 = tpu.matmul %82, %4, %cst_36 {dimension_numbers = #tpu.dot_dimension_numbers<[1], [0], [0], [1], [0, 0, 1, 1], [], []>} : vector<4x32xf32>, vector<32x128xf32>, vector<4x128xf32> -> vector<4x128xf32>
      %87 = arith.addf %85, %86 : vector<4x128xf32>
      %88 = vector.extract_strided_slice %87 {offsets = [0, 0], sizes = [4, 32], strides = [1, 1]} : vector<4x128xf32> to vector<4x32xf32>
      %89 = arith.negf %88 : vector<4x32xf32>
      %90 = math.exp %89 : vector<4x32xf32>
      %cst_37 = arith.constant 1.000000e+00 : f32
      %91 = vector.broadcast %cst_37 : f32 to vector<4x32xf32>
      %92 = arith.addf %91, %90 : vector<4x32xf32>
      %93 = arith.divf %91, %92 : vector<4x32xf32>
      %94 = vector.extract_strided_slice %87 {offsets = [0, 32], sizes = [4, 32], strides = [1, 1]} : vector<4x128xf32> to vector<4x32xf32>
      %95 = arith.negf %94 : vector<4x32xf32>
      %96 = math.exp %95 : vector<4x32xf32>
      %cst_38 = arith.constant 1.000000e+00 : f32
      %97 = vector.broadcast %cst_38 : f32 to vector<4x32xf32>
      %98 = arith.addf %97, %96 : vector<4x32xf32>
      %99 = arith.divf %97, %98 : vector<4x32xf32>
      %100 = vector.extract_strided_slice %87 {offsets = [0, 64], sizes = [4, 32], strides = [1, 1]} : vector<4x128xf32> to vector<4x32xf32>
      %101 = math.tanh %100 : vector<4x32xf32>
      %102 = vector.extract_strided_slice %87 {offsets = [0, 96], sizes = [4, 32], strides = [1, 1]} : vector<4x128xf32> to vector<4x32xf32>
      %103 = arith.negf %102 : vector<4x32xf32>
      %104 = math.exp %103 : vector<4x32xf32>
      %cst_39 = arith.constant 1.000000e+00 : f32
      %105 = vector.broadcast %cst_39 : f32 to vector<4x32xf32>
      %106 = arith.addf %105, %104 : vector<4x32xf32>
      %107 = arith.divf %105, %106 : vector<4x32xf32>
      %108 = arith.mulf %99, %83 : vector<4x32xf32>
      %109 = arith.mulf %93, %101 : vector<4x32xf32>
      %110 = arith.addf %108, %109 : vector<4x32xf32>
      %111 = math.tanh %110 : vector<4x32xf32>
      %112 = arith.mulf %107, %111 : vector<4x32xf32>
      %c0_40 = arith.constant 0 : index
      %c1_41 = arith.constant 1 : index
      %c0_42 = arith.constant 0 : index
      %c0_43 = arith.constant 0 : index
      %113 = vector.load %arg6[%c0_40, %c1_41, %c0_42, %c0_43] : memref<1x4x4x32xf32, #tpu.memory_space<vmem>>, vector<1x1x4x32xf32>
      %114 = vector.shape_cast %113 : vector<1x1x4x32xf32> to vector<4x32xf32>
      %115 = vector.shape_cast %112 : vector<4x32xf32> to vector<1x1x4x32xf32>
      tpu.vector_store %arg6[%c0_40, %c1_41, %c0_42, %c0_43], %115 {strides = array<i32>} : memref<1x4x4x32xf32, #tpu.memory_space<vmem>>, vector<1x1x4x32xf32>,
      %c0_44 = arith.constant 0 : index
      %c0_45 = arith.constant 0 : index
      %c0_46 = arith.constant 0 : index
      %c0_47 = arith.constant 0 : index
      %116 = vector.load %arg2[%c0_44, %c0_45, %c0_46, %c0_47] : memref<1x4x4x128xf32, #tpu.memory_space<vmem>>, vector<1x1x4x128xf32>
      %117 = vector.shape_cast %116 : vector<1x1x4x128xf32> to vector<4x128xf32>
      %cst_48 = arith.constant dense<0.000000e+00> : vector<4x128xf32>
      %118 = tpu.matmul %112, %4, %cst_48 {dimension_numbers = #tpu.dot_dimension_numbers<[1], [0], [0], [1], [0, 0, 1, 1], [], []>} : vector<4x32xf32>, vector<32x128xf32>, vector<4x128xf32> -> vector<4x128xf32>
      %119 = arith.addf %117, %118 : vector<4x128xf32>
      %120 = vector.extract_strided_slice %119 {offsets = [0, 0], sizes = [4, 32], strides = [1, 1]} : vector<4x128xf32> to vector<4x32xf32>
      %121 = arith.negf %120 : vector<4x32xf32>
      %122 = math.exp %121 : vector<4x32xf32>
      %cst_49 = arith.constant 1.000000e+00 : f32
      %123 = vector.broadcast %cst_49 : f32 to vector<4x32xf32>
      %124 = arith.addf %123, %122 : vector<4x32xf32>
      %125 = arith.divf %123, %124 : vector<4x32xf32>
      %126 = vector.extract_strided_slice %119 {offsets = [0, 32], sizes = [4, 32], strides = [1, 1]} : vector<4x128xf32> to vector<4x32xf32>
      %127 = arith.negf %126 : vector<4x32xf32>
      %128 = math.exp %127 : vector<4x32xf32>
      %cst_50 = arith.constant 1.000000e+00 : f32
      %129 = vector.broadcast %cst_50 : f32 to vector<4x32xf32>
      %130 = arith.addf %129, %128 : vector<4x32xf32>
      %131 = arith.divf %129, %130 : vector<4x32xf32>
      %132 = vector.extract_strided_slice %119 {offsets = [0, 64], sizes = [4, 32], strides = [1, 1]} : vector<4x128xf32> to vector<4x32xf32>
      %133 = math.tanh %132 : vector<4x32xf32>
      %134 = vector.extract_strided_slice %119 {offsets = [0, 96], sizes = [4, 32], strides = [1, 1]} : vector<4x128xf32> to vector<4x32xf32>
      %135 = arith.negf %134 : vector<4x32xf32>
      %136 = math.exp %135 : vector<4x32xf32>
      %cst_51 = arith.constant 1.000000e+00 : f32
      %137 = vector.broadcast %cst_51 : f32 to vector<4x32xf32>
      %138 = arith.addf %137, %136 : vector<4x32xf32>
      %139 = arith.divf %137, %138 : vector<4x32xf32>
      %140 = arith.mulf %131, %110 : vector<4x32xf32>
      %141 = arith.mulf %125, %133 : vector<4x32xf32>
      %142 = arith.addf %140, %141 : vector<4x32xf32>
      %143 = math.tanh %142 : vector<4x32xf32>
      %144 = arith.mulf %139, %143 : vector<4x32xf32>
      %c0_52 = arith.constant 0 : index
      %c0_53 = arith.constant 0 : index
      %c0_54 = arith.constant 0 : index
      %c0_55 = arith.constant 0 : index
      %145 = vector.load %arg6[%c0_52, %c0_53, %c0_54, %c0_55] : memref<1x4x4x32xf32, #tpu.memory_space<vmem>>, vector<1x1x4x32xf32>
      %146 = vector.shape_cast %145 : vector<1x1x4x32xf32> to vector<4x32xf32>
      %147 = vector.shape_cast %144 : vector<4x32xf32> to vector<1x1x4x32xf32>
      tpu.vector_store %arg6[%c0_52, %c0_53, %c0_54, %c0_55], %147 {strides = array<i32>} : memref<1x4x4x32xf32, #tpu.memory_space<vmem>>, vector<1x1x4x32xf32>,
      %c0_56 = arith.constant 0 : index
      %c0_57 = arith.constant 0 : index
      %148 = vector.load %arg9[%c0_56, %c0_57] : memref<4x32xf32, #tpu.memory_space<vmem>>, vector<4x32xf32>
      tpu.vector_store %arg9[%c0_56, %c0_57], %144 {strides = array<i32>} : memref<4x32xf32, #tpu.memory_space<vmem>>, vector<4x32xf32>,
      %c0_58 = arith.constant 0 : index
      %c0_59 = arith.constant 0 : index
      %149 = vector.load %arg10[%c0_58, %c0_59] : memref<4x32xf32, #tpu.memory_space<vmem>>, vector<4x32xf32>
      tpu.vector_store %arg10[%c0_58, %c0_59], %142 {strides = array<i32>} : memref<4x32xf32, #tpu.memory_space<vmem>>, vector<4x32xf32>,
      %c2_i32_60 = arith.constant 2 : i32
      %150 = arith.cmpi eq, %arg1, %c2_i32_60 : i32
      %151 = arith.extui %150 : i1 to i32
      %c0_i32_61 = arith.constant 0 : i32
      %152 = arith.cmpi ne, %151, %c0_i32_61 : i32
      scf.if %152 {
        %c0_62 = arith.constant 0 : index
        %c0_63 = arith.constant 0 : index
        %c0_64 = arith.constant 0 : index
        %153 = vector.load %arg7[%c0_62, %c0_63, %c0_64] : memref<1x4x32xf32, #tpu.memory_space<vmem>>, vector<1x4x32xf32>
        %154 = vector.shape_cast %153 : vector<1x4x32xf32> to vector<4x32xf32>
        %155 = vector.shape_cast %144 : vector<4x32xf32> to vector<1x4x32xf32>
        tpu.vector_store %arg7[%c0_62, %c0_63, %c0_64], %155 {strides = array<i32>} : memref<1x4x32xf32, #tpu.memory_space<vmem>>, vector<1x4x32xf32>,
        %c0_65 = arith.constant 0 : index
        %c0_66 = arith.constant 0 : index
        %c0_67 = arith.constant 0 : index
        %156 = vector.load %arg8[%c0_65, %c0_66, %c0_67] : memref<1x4x32xf32, #tpu.memory_space<vmem>>, vector<1x4x32xf32>
        %157 = vector.shape_cast %156 : vector<1x4x32xf32> to vector<4x32xf32>
        %158 = vector.shape_cast %142 : vector<4x32xf32> to vector<1x4x32xf32>
        tpu.vector_store %arg8[%c0_65, %c0_66, %c0_67], %158 {strides = array<i32>} : memref<1x4x32xf32, #tpu.memory_space<vmem>>, vector<1x4x32xf32>,
      } else {
      }
    } else {
    }
    return
  }
  func.func @transform_0(%arg0: i32, %arg1: i32) -> (i32, i32, i32, i32) {
    %c2_i32 = arith.constant 2 : i32
    %0 = arith.muli %arg0, %c2_i32 : i32
    %c2_i32_0 = arith.constant 2 : i32
    %1 = arith.muli %c2_i32_0, %arg0 : i32
    %c1_i32 = arith.constant 1 : i32
    %2 = arith.subi %c1_i32, %1 : i32
    %3 = arith.muli %2, %arg1 : i32
    %4 = arith.addi %0, %3 : i32
    %c0_i32 = arith.constant 0 : i32
    %c0_i32_1 = arith.constant 0 : i32
    %c0_i32_2 = arith.constant 0 : i32
    return %arg0, %4, %c0_i32, %c0_i32_1 : i32, i32, i32, i32
  }
  func.func @transform_1(%arg0: i32, %arg1: i32) -> (i32, i32, i32) {
    %c0_i32 = arith.constant 0 : i32
    %c0_i32_0 = arith.constant 0 : i32
    %c0_i32_1 = arith.constant 0 : i32
    return %arg0, %c0_i32, %c0_i32_0 : i32, i32, i32
  }
  func.func @transform_2(%arg0: i32, %arg1: i32) -> (i32, i32, i32) {
    %c0_i32 = arith.constant 0 : i32
    %c0_i32_0 = arith.constant 0 : i32
    %c0_i32_1 = arith.constant 0 : i32
    return %arg0, %c0_i32, %c0_i32_0 : i32, i32, i32
  }
  func.func @transform_3(%arg0: i32, %arg1: i32) -> (i32, i32, i32) {
    %c0_i32 = arith.constant 0 : i32
    %c0_i32_0 = arith.constant 0 : i32
    %c0_i32_1 = arith.constant 0 : i32
    return %arg0, %c0_i32, %c0_i32_0 : i32, i32, i32
  }
  func.func @transform_4(%arg0: i32, %arg1: i32) -> (i32, i32, i32, i32) {
    %c2_i32 = arith.constant 2 : i32
    %0 = arith.muli %arg0, %c2_i32 : i32
    %c2_i32_0 = arith.constant 2 : i32
    %1 = arith.muli %c2_i32_0, %arg0 : i32
    %c1_i32 = arith.constant 1 : i32
    %2 = arith.subi %c1_i32, %1 : i32
    %3 = arith.muli %2, %arg1 : i32
    %4 = arith.addi %0, %3 : i32
    %c0_i32 = arith.constant 0 : i32
    %c0_i32_1 = arith.constant 0 : i32
    %c0_i32_2 = arith.constant 0 : i32
    return %arg0, %4, %c0_i32, %c0_i32_1 : i32, i32, i32, i32
  }
  func.func @transform_5(%arg0: i32, %arg1: i32) -> (i32, i32, i32) {
    %c0_i32 = arith.constant 0 : i32
    %c0_i32_0 = arith.constant 0 : i32
    %c0_i32_1 = arith.constant 0 : i32
    return %arg0, %c0_i32, %c0_i32_0 : i32, i32, i32
  }
  func.func @transform_6(%arg0: i32, %arg1: i32) -> (i32, i32, i32) {
    %c0_i32 = arith.constant 0 : i32
    %c0_i32_0 = arith.constant 0 : i32
    %c0_i32_1 = arith.constant 0 : i32
    return %arg0, %c0_i32, %c0_i32_0 : i32, i32, i32
  }
}

</mosaic_0001>

<llo_original>
// kernel: encoder_forward.2
$region0: #{encoder_forward.2}
  #allocation0 [shape = 'u32[]', space=smem, size = 0x4, offset = 0x4, fixed_abs, tag = 'smem constant byte address 0x4 - core index']
  #allocation1 [shape = 'u32[144,128]{1,0:T(1,128)}', space=vmem, size = 0x12000, scoped, tag = 'internal scratch']
  #allocation2 [shape = 'f32[4,32]{1,0:T(4,128)}', space=vmem, size = 0x800, scoped, tag = 'scratch operand']
  #allocation3 [shape = 'f32[4,32]{1,0:T(4,128)}', space=vmem, size = 0x800, scoped, tag = 'scratch operand']
  %s0 = inlined_call_operand.vmem [shape: f32[2,12,4,128], index: 0, kind: input, shape index: {}]
  %s1 = inlined_call_operand.vmem [shape: f32[2,32,128], index: 1, kind: input, shape index: {}]
  %s2 = inlined_call_operand.vmem [shape: f32[2,4,32], index: 2, kind: input, shape index: {}]
  %s3 = inlined_call_operand.vmem [shape: f32[2,4,32], index: 3, kind: input, shape index: {}]
  %s4 = inlined_call_operand.vmem [shape: f32[2,12,4,32], index: 4, kind: output, shape index: {0}]
  %s5 = inlined_call_operand.vmem [shape: f32[2,4,32], index: 5, kind: output, shape index: {1}]
  %s6 = inlined_call_operand.vmem [shape: f32[2,4,32], index: 6, kind: output, shape index: {2}]
  %7 = xla_tuple %s4, %s5, %s6
  %s8 = sld [smem:[#allocation0]]
  $region85: #{encoder_forward.2} parent=0
    _
  %s10 = ssub.s32 1, %s8
  %s11 = scalar_select 0, %s10, %s8
  loop: start=0, step=1, limit=8
  $region2: #{encoder_forward.2} parent=0 // loop_pre_header
    _
  $region3: #{encoder_forward.2} parent=0 // loop_header
    %s13 = sphi 0, %s17
    %p14 = scmp.ge.s32.totalorder %s13, 8
    %s20 = sphi 0, %s32
    %s21 = sphi 0, %s28
    %s22 = sphi 0, %s20
    %s23 = sphi 0, %s21
    %s24 = sphi 0, %s22
    %s25 = sphi 0, %s23
    %s45 = sphi 0, %s47
    %s48 = sphi 0, %s45
    %s49 = sphi 0, %s48
    %s65 = sphi 0, %s49
    %s71 = sphi 0, %s73
    %s74 = sphi 0, %s71
    %s75 = sphi 0, %s74
    %s91 = sphi 0, %s75
    %s97 = sphi 0, %s99
    %s100 = sphi 0, %s97
    %s101 = sphi 0, %s100
    %s117 = sphi 0, %s101
    %s123 = sphi 0, %s125
    %s126 = sphi 0, %s123
    %s127 = sphi 0, %s126
    %s143 = sphi 0, %s127
    %s159 = sphi 0, %s161
    %s162 = sphi 0, %s159
    %s163 = sphi 0, %s162
    %s179 = sphi 0, %s163
    %s185 = sphi 0, %s187
    %s188 = sphi 0, %s185
    %s189 = sphi 0, %s188
    %s205 = sphi 0, %s189
    %s211 = sphi 0, %s213
    %s214 = sphi 0, %s211
    %s215 = sphi 0, %s214
    %s231 = sphi 0, %s215
  $region4: #{encoder_forward.2} parent=0 // loop_header_branch
    %16 = sbr.rel (%p14) target = $region8
  $region5: #{encoder_forward.2} parent=0 // loop_body
    %s18 = ssub.s32 %s13, 1
    %s19 = ssub.s32 %s13, 2
    %s26 = sadd.s32 1, %s21
    %p27 = scmp.ge.s32.totalorder %s26, 3
    %s28 = scalar_select %p27, 0, %s26
    %s29 = sadd.s32 1, %s20
    %s30 = scalar_select %p27, %s29, %s20
    %p31 = scmp.ge.s32.totalorder %s30, 2
    %s32 = scalar_select %p31, 0, %s30
    %s33 = smul.u32 %s20, 2
    %s34 = ssub.s32 1, %s33
    %s35 = smul.u32 %s34, %s21
    %s36 = sadd.s32 %s33, %s35
    %s37 = smul.u32 %s32, 2
    %s38 = ssub.s32 1, %s37
    %s39 = smul.u32 %s38, %s28
    %s40 = sadd.s32 %s37, %s39
    %s41 = ssub.s32 %s20, %s32
    %s42 = ssub.s32 %s36, %s40
    %s43 = sor.u32 %s41, %s42
    %p44 = scmp.eq.s32.totalorder %s43, 0
    %s46 = sadd.s32 %s45, 1
    %s47 = scalar_select %p44, %s45, %s46
    %p50 = pneg %p44
    %p51 = scmp.eq.s32.totalorder %s13, 5
    %p52 = por %p50, %p51
    %p53 = scmp.ne.s32.totalorder %s45, %s48
    %p54 = scmp.eq.s32.totalorder %s13, 0
    %p55 = por %p53, %p54
    %p56 = scmp.ne.s32.totalorder %s45, %s48
    %p57 = scmp.eq.s32.totalorder %s18, 5
    %p58 = por %p56, %p57
    %p59 = scmp.ne.s32.totalorder %s48, %s49
    %p60 = scmp.eq.s32.totalorder %s18, 0
    %p61 = por %p59, %p60
    %p62 = scmp.ne.s32.totalorder %s48, %s49
    %p63 = scmp.eq.s32.totalorder %s19, 5
    %p64 = por %p62, %p63
    %p66 = scmp.ne.s32.totalorder %s49, %s65
    %p67 = scmp.eq.s32.totalorder %s19, 0
    %p68 = por %p66, %p67
    %s69 = ssub.s32 %s20, %s32
    %p70 = scmp.eq.s32.totalorder %s69, 0
    %s72 = sadd.s32 %s71, 1
    %s73 = scalar_select %p70, %s71, %s72
    %p76 = pneg %p70
    %p77 = scmp.eq.s32.totalorder %s13, 5
    %p78 = por %p76, %p77
    %p79 = scmp.ne.s32.totalorder %s71, %s74
    %p80 = scmp.eq.s32.totalorder %s13, 0
    %p81 = por %p79, %p80
    %p82 = scmp.ne.s32.totalorder %s71, %s74
    %p83 = scmp.eq.s32.totalorder %s18, 5
    %p84 = por %p82, %p83
    %p85 = scmp.ne.s32.totalorder %s74, %s75
    %p86 = scmp.eq.s32.totalorder %s18, 0
    %p87 = por %p85, %p86
    %p88 = scmp.ne.s32.totalorder %s74, %s75
    %p89 = scmp.eq.s32.totalorder %s19, 5
    %p90 = por %p88, %p89
    %p92 = scmp.ne.s32.totalorder %s75, %s91
    %p93 = scmp.eq.s32.totalorder %s19, 0
    %p94 = por %p92, %p93
    %s95 = ssub.s32 %s20, %s32
    %p96 = scmp.eq.s32.totalorder %s95, 0
    %s98 = sadd.s32 %s97, 1
    %s99 = scalar_select %p96, %s97, %s98
    %p102 = pneg %p96
    %p103 = scmp.eq.s32.totalorder %s13, 5
    %p104 = por %p102, %p103
    %p105 = scmp.ne.s32.totalorder %s97, %s100
    %p106 = scmp.eq.s32.totalorder %s13, 0
    %p107 = por %p105, %p106
    %p108 = scmp.ne.s32.totalorder %s97, %s100
    %p109 = scmp.eq.s32.totalorder %s18, 5
    %p110 = por %p108, %p109
    %p111 = scmp.ne.s32.totalorder %s100, %s101
    %p112 = scmp.eq.s32.totalorder %s18, 0
    %p113 = por %p111, %p112
    %p114 = scmp.ne.s32.totalorder %s100, %s101
    %p115 = scmp.eq.s32.totalorder %s19, 5
    %p116 = por %p114, %p115
    %p118 = scmp.ne.s32.totalorder %s101, %s117
    %p119 = scmp.eq.s32.totalorder %s19, 0
    %p120 = por %p118, %p119
    %s121 = ssub.s32 %s20, %s32
    %p122 = scmp.eq.s32.totalorder %s121, 0
    %s124 = sadd.s32 %s123, 1
    %s125 = scalar_select %p122, %s123, %s124
    %p128 = pneg %p122
    %p129 = scmp.eq.s32.totalorder %s13, 5
    %p130 = por %p128, %p129
    %p131 = scmp.ne.s32.totalorder %s123, %s126
    %p132 = scmp.eq.s32.totalorder %s13, 0
    %p133 = por %p131, %p132
    %p134 = scmp.ne.s32.totalorder %s123, %s126
    %p135 = scmp.eq.s32.totalorder %s18, 5
    %p136 = por %p134, %p135
    %p137 = scmp.ne.s32.totalorder %s126, %s127
    %p138 = scmp.eq.s32.totalorder %s18, 0
    %p139 = por %p137, %p138
    %p140 = scmp.ne.s32.totalorder %s126, %s127
    %p141 = scmp.eq.s32.totalorder %s19, 5
    %p142 = por %p140, %p141
    %p144 = scmp.ne.s32.totalorder %s127, %s143
    %p145 = scmp.eq.s32.totalorder %s19, 0
    %p146 = por %p144, %p145
    %s147 = smul.u32 %s20, 2
    %s148 = ssub.s32 1, %s147
    %s149 = smul.u32 %s148, %s21
    %s150 = sadd.s32 %s147, %s149
    %s151 = smul.u32 %s32, 2
    %s152 = ssub.s32 1, %s151
    %s153 = smul.u32 %s152, %s28
    %s154 = sadd.s32 %s151, %s153
    %s155 = ssub.s32 %s20, %s32
    %s156 = ssub.s32 %s150, %s154
    %s157 = sor.u32 %s155, %s156
    %p158 = scmp.eq.s32.totalorder %s157, 0
    %s160 = sadd.s32 %s159, 1
    %s161 = scalar_select %p158, %s159, %s160
    %p164 = pneg %p158
    %p165 = scmp.eq.s32.totalorder %s13, 5
    %p166 = por %p164, %p165
    %p167 = scmp.ne.s32.totalorder %s159, %s162
    %p168 = scmp.eq.s32.totalorder %s13, 0
    %p169 = por %p167, %p168
    %p170 = scmp.ne.s32.totalorder %s159, %s162
    %p171 = scmp.eq.s32.totalorder %s18, 5
    %p172 = por %p170, %p171
    %p173 = scmp.ne.s32.totalorder %s162, %s163
    %p174 = scmp.eq.s32.totalorder %s18, 0
    %p175 = por %p173, %p174
    %p176 = scmp.ne.s32.totalorder %s162, %s163
    %p177 = scmp.eq.s32.totalorder %s19, 5
    %p178 = por %p176, %p177
    %p180 = scmp.ne.s32.totalorder %s163, %s179
    %p181 = scmp.eq.s32.totalorder %s19, 0
    %p182 = por %p180, %p181
    %s183 = ssub.s32 %s20, %s32
    %p184 = scmp.eq.s32.totalorder %s183, 0
    %s186 = sadd.s32 %s185, 1
    %s187 = scalar_select %p184, %s185, %s186
    %p190 = pneg %p184
    %p191 = scmp.eq.s32.totalorder %s13, 5
    %p192 = por %p190, %p191
    %p193 = scmp.ne.s32.totalorder %s185, %s188
    %p194 = scmp.eq.s32.totalorder %s13, 0
    %p195 = por %p193, %p194
    %p196 = scmp.ne.s32.totalorder %s185, %s188
    %p197 = scmp.eq.s32.totalorder %s18, 5
    %p198 = por %p196, %p197
    %p199 = scmp.ne.s32.totalorder %s188, %s189
    %p200 = scmp.eq.s32.totalorder %s18, 0
    %p201 = por %p199, %p200
    %p202 = scmp.ne.s32.totalorder %s188, %s189
    %p203 = scmp.eq.s32.totalorder %s19, 5
    %p204 = por %p202, %p203
    %p206 = scmp.ne.s32.totalorder %s189, %s205
    %p207 = scmp.eq.s32.totalorder %s19, 0
    %p208 = por %p206, %p207
    %s209 = ssub.s32 %s20, %s32
    %p210 = scmp.eq.s32.totalorder %s209, 0
    %s212 = sadd.s32 %s211, 1
    %s213 = scalar_select %p210, %s211, %s212
    %p216 = pneg %p210
    %p217 = scmp.eq.s32.totalorder %s13, 5
    %p218 = por %p216, %p217
    %p219 = scmp.ne.s32.totalorder %s211, %s214
    %p220 = scmp.eq.s32.totalorder %s13, 0
    %p221 = por %p219, %p220
    %p222 = scmp.ne.s32.totalorder %s211, %s214
    %p223 = scmp.eq.s32.totalorder %s18, 5
    %p224 = por %p222, %p223
    %p225 = scmp.ne.s32.totalorder %s214, %s215
    %p226 = scmp.eq.s32.totalorder %s18, 0
    %p227 = por %p225, %p226
    %p228 = scmp.ne.s32.totalorder %s214, %s215
    %p229 = scmp.eq.s32.totalorder %s19, 5
    %p230 = por %p228, %p229
    %p232 = scmp.ne.s32.totalorder %s215, %s231
    %p233 = scmp.eq.s32.totalorder %s19, 0
    %p234 = por %p232, %p233
    %p235 = scmp.le.s32.totalorder 1, %s13
    %p236 = scmp.lt.s32.totalorder %s13, 7
    %p237 = pnand %p235, %p236
    %p238 = pneg %p237
    // Predicated region
    $region9: #{encoder_forward.2} parent=5 // pred_check
      _
    $region10: #{encoder_forward.2} parent=5 // pred_check_branch
      %240 = sbr.rel (%p237) target = $region12
    $region11: #{encoder_forward.2} parent=5 // pred_region
      %s241 = ssub.s32 %s13, 1
    $region12: #{encoder_forward.2} parent=5 // pred_fallthru
      _
    %p242 = scmp.lt.s32.totalorder %s13, 6
    // Predicated region
    $region13: #{encoder_forward.2} parent=5 // pred_check
      %p243 = pneg %p242
    $region14: #{encoder_forward.2} parent=5 // pred_check_branch
      %245 = sbr.rel (%p243) target = $region16
    $region15: #{encoder_forward.2} parent=5 // pred_region
      // Predicated region
      $region17: #{encoder_forward.2} parent=15 // pred_check
        %p246 = pneg %p55
      $region18: #{encoder_forward.2} parent=15 // pred_check_branch
        %248 = sbr.rel (%p246) target = $region20
      $region19: #{encoder_forward.2} parent=15 // pred_region
        %s249 = smul.u32 %s20, 2
        %s250 = ssub.s32 1, %s249
        %s251 = smul.u32 %s250, %s21
        %s252 = sadd.s32 %s249, %s251
        %s253 = smul.u32 4, %s252
        %p254 = scmp.lt.s32.totalorder %s20, 1
        %s255 = scalar_select %p254, %s20, 1
        %p256 = scmp.lt.s32.totalorder %s253, 11
        %s257 = scalar_select %p256, %s253, 11
        %s258 = smul.addr %s255, 12
        %s259 = sadd.s32 %s257, %s258
        %s260 = smul.addr %s259, 4
        %s261 = scalar_lea.vmem %s0, %s260
        %s262 = smul.u32 %s20, 2
        %s263 = ssub.s32 1, %s262
        %s264 = smul.u32 %s263, %s21
        %s265 = sadd.s32 %s262, %s264
        %s266 = smul.u32 4, %s265
      $region20: #{encoder_forward.2} parent=15 // pred_fallthru
        _
      // Predicated region
      $region21: #{encoder_forward.2} parent=15 // pred_check
        %p267 = pneg %p81
      $region22: #{encoder_forward.2} parent=15 // pred_check_branch
        %269 = sbr.rel (%p267) target = $region24
      $region23: #{encoder_forward.2} parent=15 // pred_region
        %p270 = scmp.lt.s32.totalorder %s20, 1
        %s271 = scalar_select %p270, %s20, 1
        %s272 = smul.addr %s271, 4
        %s273 = smul.addr %s272, 8
        %s274 = scalar_lea.vmem %s1, %s273
      $region24: #{encoder_forward.2} parent=15 // pred_fallthru
        _
      // Predicated region
      $region25: #{encoder_forward.2} parent=15 // pred_check
        %p275 = pneg %p107
      $region26: #{encoder_forward.2} parent=15 // pred_check_branch
        %277 = sbr.rel (%p275) target = $region28
      $region27: #{encoder_forward.2} parent=15 // pred_region
        %p278 = scmp.lt.s32.totalorder %s20, 1
        %s279 = scalar_select %p278, %s20, 1
        %s280 = smul.addr %s279, 4
        %s281 = scalar_lea.vmem %s2, %s280
      $region28: #{encoder_forward.2} parent=15 // pred_fallthru
        _
      // Predicated region
      $region29: #{encoder_forward.2} parent=15 // pred_check
        %p282 = pneg %p133
      $region30: #{encoder_forward.2} parent=15 // pred_check_branch
        %284 = sbr.rel (%p282) target = $region32
      $region31: #{encoder_forward.2} parent=15 // pred_region
        %p285 = scmp.lt.s32.totalorder %s20, 1
        %s286 = scalar_select %p285, %s20, 1
        %s287 = smul.addr %s286, 4
        %s288 = scalar_lea.vmem %s3, %s287
      $region32: #{encoder_forward.2} parent=15 // pred_fallthru
        _
    $region16: #{encoder_forward.2} parent=5 // pred_fallthru
      _
    %p289 = scmp.le.s32.totalorder 1, %s13
    %p290 = scmp.lt.s32.totalorder %s13, 7
    %p291 = pnand %p289, %p290
    %p292 = pneg %p291
    // Predicated region
    $region33: #{encoder_forward.2} parent=5 // pred_check
      _
    $region34: #{encoder_forward.2} parent=5 // pred_check_branch
      %294 = sbr.rel (%p291) target = $region36
    $region35: #{encoder_forward.2} parent=5 // pred_region
      %s295 = ssub.s32 %s13, 1
      %s296 = smul.u32 %s22, 2
      %s297 = ssub.s32 1, %s296
      %s298 = smul.u32 %s297, %s23
      %s299 = sadd.s32 %s296, %s298
      %s300 = smul.u32 4, %s299
      %p301 = scmp.lt.s32.totalorder %s22, 1
      %s302 = scalar_select %p301, %s22, 1
      %p303 = scmp.lt.s32.totalorder %s300, 11
      %s304 = scalar_select %p303, %s300, 11
      %s305 = smul.addr %s302, 12
      %s306 = sadd.s32 %s304, %s305
      %s307 = smul.addr %s306, 4
      %s308 = scalar_lea.vmem %s0, %s307
      %p309 = pneg %p61
      %p310 = pneg %p58
      %p311 = scmp.lt.s32.totalorder %s22, 1
      %s312 = scalar_select %p311, %s22, 1
      %s313 = smul.addr %s312, 4
      %s314 = smul.addr %s313, 8
      %s315 = scalar_lea.vmem %s1, %s314
      %p316 = pneg %p87
      %p317 = pneg %p84
      %p318 = scmp.lt.s32.totalorder %s22, 1
      %s319 = scalar_select %p318, %s22, 1
      %s320 = smul.addr %s319, 4
      %s321 = scalar_lea.vmem %s2, %s320
      %p322 = pneg %p113
      %p323 = pneg %p110
      %p324 = scmp.lt.s32.totalorder %s22, 1
      %s325 = scalar_select %p324, %s22, 1
      %s326 = smul.addr %s325, 4
      %s327 = scalar_lea.vmem %s3, %s326
      %p328 = pneg %p139
      %p329 = pneg %p136
      %p330 = pneg %p175
      %p331 = pneg %p172
      %s332 = smul.u32 %s22, 2
      %s333 = ssub.s32 1, %s332
      %s334 = smul.u32 %s333, %s23
      %s335 = sadd.s32 %s332, %s334
      %s336 = smul.u32 4, %s335
      %p337 = scmp.lt.s32.totalorder %s22, 1
      %s338 = scalar_select %p337, %s22, 1
      %p339 = scmp.lt.s32.totalorder %s336, 11
      %s340 = scalar_select %p339, %s336, 11
      %s341 = smul.addr %s338, 12
      %s342 = sadd.s32 %s340, %s341
      %s343 = smul.addr %s342, 4
      %s344 = scalar_lea.vmem %s4, %s343
      %p345 = pneg %p201
      %p346 = pneg %p198
      %p347 = scmp.lt.s32.totalorder %s22, 1
      %s348 = scalar_select %p347, %s22, 1
      %s349 = smul.addr %s348, 4
      %s350 = scalar_lea.vmem %s5, %s349
      %p351 = pneg %p227
      %p352 = pneg %p224
      %p353 = scmp.lt.s32.totalorder %s22, 1
      %s354 = scalar_select %p353, %s22, 1
      %s355 = smul.addr %s354, 4
      %s356 = scalar_lea.vmem %s6, %s355
      %s357 = smul.u32 %s22, 2
      %s358 = ssub.s32 1, %s357
      %s359 = smul.u32 %s358, %s23
      %s360 = sadd.s32 %s357, %s359
      %s361 = smul.u32 4, %s360
      %p362 = scmp.lt.s32.totalorder %s22, 1
      %s363 = scalar_select %p362, %s22, 1
      %p364 = scmp.lt.s32.totalorder %s361, 11
      %s365 = scalar_select %p364, %s361, 11
      %s366 = smul.addr %s363, 12
      %s367 = sadd.s32 %s365, %s366
      %s368 = smul.addr %s367, 4
      %s369 = scalar_lea.vmem %s0, %s368
      %s370 = smul.u32 %s22, 2
      %s371 = ssub.s32 1, %s370
      %s372 = smul.u32 %s371, %s23
      %s373 = sadd.s32 %s370, %s372
      %s374 = smul.u32 4, %s373
      %p375 = scmp.lt.s32.totalorder %s22, 1
      %s376 = scalar_select %p375, %s22, 1
      %s377 = smul.addr %s376, 4
      %s378 = smul.addr %s377, 8
      %s379 = scalar_lea.vmem %s1, %s378
      %p380 = scmp.lt.s32.totalorder %s22, 1
      %s381 = scalar_select %p380, %s22, 1
      %s382 = smul.addr %s381, 4
      %s383 = scalar_lea.vmem %s2, %s382
      %p384 = scmp.lt.s32.totalorder %s22, 1
      %s385 = scalar_select %p384, %s22, 1
      %s386 = smul.addr %s385, 4
      %s387 = scalar_lea.vmem %s3, %s386
      %s388 = smul.u32 %s22, 2
      %s389 = ssub.s32 1, %s388
      %s390 = smul.u32 %s389, %s23
      %s391 = sadd.s32 %s388, %s390
      %s392 = smul.u32 4, %s391
      %p393 = scmp.lt.s32.totalorder %s22, 1
      %s394 = scalar_select %p393, %s22, 1
      %p395 = scmp.lt.s32.totalorder %s392, 11
      %s396 = scalar_select %p395, %s392, 11
      %s397 = smul.addr %s394, 12
      %s398 = sadd.s32 %s396, %s397
      %s399 = smul.addr %s398, 4
      %s400 = scalar_lea.vmem %s4, %s399
      %s401 = smul.u32 %s22, 2
      %s402 = ssub.s32 1, %s401
      %s403 = smul.u32 %s402, %s23
      %s404 = sadd.s32 %s401, %s403
      %s405 = smul.u32 4, %s404
      %p406 = scmp.lt.s32.totalorder %s22, 1
      %s407 = scalar_select %p406, %s22, 1
      %s408 = smul.addr %s407, 4
      %s409 = scalar_lea.vmem %s5, %s408
      %p410 = scmp.lt.s32.totalorder %s22, 1
      %s411 = scalar_select %p410, %s22, 1
      %s412 = smul.addr %s411, 4
      %s413 = scalar_lea.vmem %s6, %s412
      %p414 = scmp.eq.s32.totalorder %s23, 0
      // Predicated region
      $region37: #{encoder_forward.2} parent=35 // pred_check
        %p415 = pneg %p414
      $region38: #{encoder_forward.2} parent=35 // pred_check_branch
        %417 = sbr.rel (%p415) target = $region40
      $region39: #{encoder_forward.2} parent=35 // pred_region
        %v418 = vld [vmem:[%s383] sm:$0xf]
        %vm419 = vcmask 257024
        %420 = vst.msk [vmem:[#allocation2] sm:$0xf] %vm419, %v418
        %v421 = vld [vmem:[%s387] sm:$0xf]
        %422 = vst.msk [vmem:[#allocation3] sm:$0xf] %vm419, %v421
      $region40: #{encoder_forward.2} parent=35 // pred_fallthru
        _
      %v423 = vld [vmem:[%s379] sm:$0xff]
      %v424 = vld [vmem:[%s379 + $0x8] sm:$0xff]
      %v425 = vld [vmem:[%s379 + $0x10] sm:$0xff]
      %v426 = vld [vmem:[%s379 + $0x18] sm:$0xff]
      %p427 = scmp.eq.s32.totalorder %s22, 0
      // Predicated region
      $region41: #{encoder_forward.2} parent=35 // pred_check
        %p428 = pneg %p427
      $region42: #{encoder_forward.2} parent=35 // pred_check_branch
        %430 = sbr.rel (%p428) target = $region44
      $region43: #{encoder_forward.2} parent=35 // pred_region
        %v431 = vld [vmem:[#allocation2] sm:$0xf]
        %v432 = vld [vmem:[#allocation3] sm:$0xf]
        %v433 = vld [vmem:[%s369] sm:$0xf]
        %vm434 = vcmask 261120
        %v436 = vsel %vm434, %v431, 0
        %438 = vmatprep.subr.mxu0 0.0
        %439 = vmatpush1.msra.mxu0 0.0
        %440 = vmatprep.subr.mxu0 0.0
        %441 = vmatpush1.msra.mxu0 0.0
        %442 = vmatprep.subr.mxu0 0.0
        %443 = vmatpush1.msra.mxu0 0.0
        %444 = vmatprep.subr.mxu0 0.0
        %445 = vmatpush1.msra.mxu0 0.0
        %446 = vmatprep.subr.mxu0 0.0
        %447 = vmatpush1.msra.mxu0 0.0
        %448 = vmatprep.subr.mxu0 0.0
        %449 = vmatpush1.msra.mxu0 0.0
        %450 = vmatprep.subr.mxu0 0.0
        %451 = vmatpush1.msra.mxu0 0.0
        %452 = vmatprep.subr.mxu0 0.0
        %453 = vmatpush1.msra.mxu0 0.0
        %454 = vmatprep.subr.mxu0 0.0
        %455 = vmatpush1.msra.mxu0 0.0
        %456 = vmatprep.subr.mxu0 0.0
        %457 = vmatpush1.msra.mxu0 0.0
        %458 = vmatprep.subr.mxu0 0.0
        %459 = vmatpush1.msra.mxu0 0.0
        %460 = vmatprep.subr.mxu0 0.0
        %461 = vmatpush1.msra.mxu0 0.0
        %462 = vmatprep.subr.mxu0 0.0
        %463 = vmatpush1.msra.mxu0 %v426
        %464 = vmatprep.subr.mxu0 0.0
        %465 = vmatpush1.msra.mxu0 %v425
        %466 = vmatprep.subr.mxu0 0.0
        %467 = vmatpush1.msra.mxu0 %v424
        %468 = vmatprep.subr.mxu0 0.0
        %469 = vmatpush1.msra.mxu0 %v423
        %470 = vmatprep.subr.mxu0 0.0
        %471 = vmatpush2.msra.mxu0 0.0
        %472 = vmatprep.subr.mxu0 0.0
        %473 = vmatpush2.msra.mxu0 0.0
        %474 = vmatprep.subr.mxu0 0.0
        %475 = vmatpush2.msra.mxu0 0.0
        %476 = vmatprep.subr.mxu0 0.0
        %477 = vmatpush2.msra.mxu0 0.0
        %478 = vmatprep.subr.mxu0 0.0
        %479 = vmatpush2.msra.mxu0 0.0
        %480 = vmatprep.subr.mxu0 0.0
        %481 = vmatpush2.msra.mxu0 0.0
        %482 = vmatprep.subr.mxu0 0.0
        %483 = vmatpush2.msra.mxu0 0.0
        %484 = vmatprep.subr.mxu0 0.0
        %485 = vmatpush2.msra.mxu0 0.0
        %486 = vmatprep.subr.mxu0 0.0
        %487 = vmatpush2.msra.mxu0 0.0
        %488 = vmatprep.subr.mxu0 0.0
        %489 = vmatpush2.msra.mxu0 0.0
        %490 = vmatprep.subr.mxu0 0.0
        %491 = vmatpush2.msra.mxu0 0.0
        %492 = vmatprep.subr.mxu0 0.0
        %493 = vmatpush2.msra.mxu0 0.0
        %494 = vmatprep.subr.mxu0 0.0
        %495 = vmatpush2.msra.mxu0 0.0
        %496 = vmatprep.subr.mxu0 0.0
        %497 = vmatpush2.msra.mxu0 0.0
        %498 = vmatprep.subr.mxu0 0.0
        %499 = vmatpush2.msra.mxu0 0.0
        %500 = vmatprep.subr.mxu0 0.0
        %501 = vmatpush2.msra.mxu0 0.0
        %502 = vmatprep.mubr.f32.mxu0 0.0
        %503 = vmatmul.mubr.f32.gmra.mxu0 %v436
        %v504 = vpop.f32.mrf.mxu0
        %v505 = vadd.f32 0.0, %v504
        %v506 = vpop.f32.mrf.mxu0
        %507 = vdwg.mxu0
        %v508 = vadd.f32 %v433, %v505
        %v509 = vxor.u32 %v508, 2147483648
        %v510 = vmul.f32 %v509, 1.442695
        %v511 = vpow.pop %v510
        %v512 = vadd.f32 %v511, 1.0
        %v513 = vrcp.pop %v512
        %v514 = vmul.f32 1.0, %v513
        %v515 = vtanh.pop %v508
        %517 = vrot.lane.b32.xlu0 %v432, 32
        %v518 = vpop.permute.xlu0 %517
        %v520 = vmul.f32 %v514, %v518
        %522 = vrot.lane.b32.xlu0 %v515, 64
        %v523 = vpop.permute.xlu0 %522
        %v525 = vmul.f32 %v514, %v523
        %527 = vrot.lane.b32.xlu0 %v525, 32
        %v528 = vpop.permute.xlu0 %527
        %v530 = vadd.f32 %v520, %v528
        %v531 = vtanh.pop %v530
        %533 = vrot.lane.b32.xlu0 %v531, 64
        %v534 = vpop.permute.xlu0 %533
        %v536 = vmul.f32 %v514, %v534
        %538 = vrot.lane.b32.xlu0 %v536, 32
        %v539 = vpop.permute.xlu0 %538
        %vm541 = vcmask 257024
        %542 = vst.msk [vmem:[%s400] sm:$0xf] %vm541, %v539
        %s543 = scalar_lea.vmem %s369, 4
        %v544 = vld [vmem:[%s543] sm:$0xf]
        %v545 = vsel %vm434, %v539, 0
        %547 = vmatprep.subr.mxu0 0.0
        %548 = vmatpush1.msra.mxu0 0.0
        %549 = vmatprep.subr.mxu0 0.0
        %550 = vmatpush1.msra.mxu0 0.0
        %551 = vmatprep.subr.mxu0 0.0
        %552 = vmatpush1.msra.mxu0 0.0
        %553 = vmatprep.subr.mxu0 0.0
        %554 = vmatpush1.msra.mxu0 0.0
        %555 = vmatprep.subr.mxu0 0.0
        %556 = vmatpush1.msra.mxu0 0.0
        %557 = vmatprep.subr.mxu0 0.0
        %558 = vmatpush1.msra.mxu0 0.0
        %559 = vmatprep.subr.mxu0 0.0
        %560 = vmatpush1.msra.mxu0 0.0
        %561 = vmatprep.subr.mxu0 0.0
        %562 = vmatpush1.msra.mxu0 0.0
        %563 = vmatprep.subr.mxu0 0.0
        %564 = vmatpush1.msra.mxu0 0.0
        %565 = vmatprep.subr.mxu0 0.0
        %566 = vmatpush1.msra.mxu0 0.0
        %567 = vmatprep.subr.mxu0 0.0
        %568 = vmatpush1.msra.mxu0 0.0
        %569 = vmatprep.subr.mxu0 0.0
        %570 = vmatpush1.msra.mxu0 0.0
        %571 = vmatprep.subr.mxu0 0.0
        %572 = vmatpush1.msra.mxu0 %v426
        %573 = vmatprep.subr.mxu0 0.0
        %574 = vmatpush1.msra.mxu0 %v425
        %575 = vmatprep.subr.mxu0 0.0
        %576 = vmatpush1.msra.mxu0 %v424
        %577 = vmatprep.subr.mxu0 0.0
        %578 = vmatpush1.msra.mxu0 %v423
        %579 = vmatprep.subr.mxu0 0.0
        %580 = vmatpush2.msra.mxu0 0.0
        %581 = vmatprep.subr.mxu0 0.0
        %582 = vmatpush2.msra.mxu0 0.0
        %583 = vmatprep.subr.mxu0 0.0
        %584 = vmatpush2.msra.mxu0 0.0
        %585 = vmatprep.subr.mxu0 0.0
        %586 = vmatpush2.msra.mxu0 0.0
        %587 = vmatprep.subr.mxu0 0.0
        %588 = vmatpush2.msra.mxu0 0.0
        %589 = vmatprep.subr.mxu0 0.0
        %590 = vmatpush2.msra.mxu0 0.0
        %591 = vmatprep.subr.mxu0 0.0
        %592 = vmatpush2.msra.mxu0 0.0
        %593 = vmatprep.subr.mxu0 0.0
        %594 = vmatpush2.msra.mxu0 0.0
        %595 = vmatprep.subr.mxu0 0.0
        %596 = vmatpush2.msra.mxu0 0.0
        %597 = vmatprep.subr.mxu0 0.0
        %598 = vmatpush2.msra.mxu0 0.0
        %599 = vmatprep.subr.mxu0 0.0
        %600 = vmatpush2.msra.mxu0 0.0
        %601 = vmatprep.subr.mxu0 0.0
        %602 = vmatpush2.msra.mxu0 0.0
        %603 = vmatprep.subr.mxu0 0.0
        %604 = vmatpush2.msra.mxu0 0.0
        %605 = vmatprep.subr.mxu0 0.0
        %606 = vmatpush2.msra.mxu0 0.0
        %607 = vmatprep.subr.mxu0 0.0
        %608 = vmatpush2.msra.mxu0 0.0
        %609 = vmatprep.subr.mxu0 0.0
        %610 = vmatpush2.msra.mxu0 0.0
        %611 = vmatprep.mubr.f32.mxu0 0.0
        %612 = vmatmul.mubr.f32.gmra.mxu0 %v545
        %v613 = vpop.f32.mrf.mxu0
        %v614 = vadd.f32 0.0, %v613
        %v615 = vpop.f32.mrf.mxu0
        %616 = vdwg.mxu0
        %v617 = vadd.f32 %v544, %v614
        %v618 = vxor.u32 %v617, 2147483648
        %v619 = vmul.f32 %v618, 1.442695
        %v620 = vpow.pop %v619
        %v621 = vadd.f32 %v620, 1.0
        %v622 = vrcp.pop %v621
        %v623 = vmul.f32 1.0, %v622
        %v624 = vtanh.pop %v617
        %v625 = vmul.f32 %v623, %v530
        %627 = vrot.lane.b32.xlu0 %v624, 64
        %v628 = vpop.permute.xlu0 %627
        %v630 = vmul.f32 %v623, %v628
        %632 = vrot.lane.b32.xlu0 %v630, 32
        %v633 = vpop.permute.xlu0 %632
        %v635 = vadd.f32 %v625, %v633
        %v636 = vtanh.pop %v635
        %638 = vrot.lane.b32.xlu0 %v636, 64
        %v639 = vpop.permute.xlu0 %638
        %v641 = vmul.f32 %v623, %v639
        %643 = vrot.lane.b32.xlu0 %v641, 32
        %v644 = vpop.permute.xlu0 %643
        %s646 = scalar_lea.vmem %s400, 4
        %647 = vst.msk [vmem:[%s646] sm:$0xf] %vm541, %v644
        %s648 = scalar_lea.vmem %s369, 8
        %v649 = vld [vmem:[%s648] sm:$0xf]
        %v650 = vsel %vm434, %v644, 0
        %652 = vmatprep.subr.mxu0 0.0
        %653 = vmatpush1.msra.mxu0 0.0
        %654 = vmatprep.subr.mxu0 0.0
        %655 = vmatpush1.msra.mxu0 0.0
        %656 = vmatprep.subr.mxu0 0.0
        %657 = vmatpush1.msra.mxu0 0.0
        %658 = vmatprep.subr.mxu0 0.0
        %659 = vmatpush1.msra.mxu0 0.0
        %660 = vmatprep.subr.mxu0 0.0
        %661 = vmatpush1.msra.mxu0 0.0
        %662 = vmatprep.subr.mxu0 0.0
        %663 = vmatpush1.msra.mxu0 0.0
        %664 = vmatprep.subr.mxu0 0.0
        %665 = vmatpush1.msra.mxu0 0.0
        %666 = vmatprep.subr.mxu0 0.0
        %667 = vmatpush1.msra.mxu0 0.0
        %668 = vmatprep.subr.mxu0 0.0
        %669 = vmatpush1.msra.mxu0 0.0
        %670 = vmatprep.subr.mxu0 0.0
        %671 = vmatpush1.msra.mxu0 0.0
        %672 = vmatprep.subr.mxu0 0.0
        %673 = vmatpush1.msra.mxu0 0.0
        %674 = vmatprep.subr.mxu0 0.0
        %675 = vmatpush1.msra.mxu0 0.0
        %676 = vmatprep.subr.mxu0 0.0
        %677 = vmatpush1.msra.mxu0 %v426
        %678 = vmatprep.subr.mxu0 0.0
        %679 = vmatpush1.msra.mxu0 %v425
        %680 = vmatprep.subr.mxu0 0.0
        %681 = vmatpush1.msra.mxu0 %v424
        %682 = vmatprep.subr.mxu0 0.0
        %683 = vmatpush1.msra.mxu0 %v423
        %684 = vmatprep.subr.mxu0 0.0
        %685 = vmatpush2.msra.mxu0 0.0
        %686 = vmatprep.subr.mxu0 0.0
        %687 = vmatpush2.msra.mxu0 0.0
        %688 = vmatprep.subr.mxu0 0.0
        %689 = vmatpush2.msra.mxu0 0.0
        %690 = vmatprep.subr.mxu0 0.0
        %691 = vmatpush2.msra.mxu0 0.0
        %692 = vmatprep.subr.mxu0 0.0
        %693 = vmatpush2.msra.mxu0 0.0
        %694 = vmatprep.subr.mxu0 0.0
        %695 = vmatpush2.msra.mxu0 0.0
        %696 = vmatprep.subr.mxu0 0.0
        %697 = vmatpush2.msra.mxu0 0.0
        %698 = vmatprep.subr.mxu0 0.0
        %699 = vmatpush2.msra.mxu0 0.0
        %700 = vmatprep.subr.mxu0 0.0
        %701 = vmatpush2.msra.mxu0 0.0
        %702 = vmatprep.subr.mxu0 0.0
        %703 = vmatpush2.msra.mxu0 0.0
        %704 = vmatprep.subr.mxu0 0.0
        %705 = vmatpush2.msra.mxu0 0.0
        %706 = vmatprep.subr.mxu0 0.0
        %707 = vmatpush2.msra.mxu0 0.0
        %708 = vmatprep.subr.mxu0 0.0
        %709 = vmatpush2.msra.mxu0 0.0
        %710 = vmatprep.subr.mxu0 0.0
        %711 = vmatpush2.msra.mxu0 0.0
        %712 = vmatprep.subr.mxu0 0.0
        %713 = vmatpush2.msra.mxu0 0.0
        %714 = vmatprep.subr.mxu0 0.0
        %715 = vmatpush2.msra.mxu0 0.0
        %716 = vmatprep.mubr.f32.mxu0 0.0
        %717 = vmatmul.mubr.f32.gmra.mxu0 %v650
        %v718 = vpop.f32.mrf.mxu0
        %v719 = vadd.f32 0.0, %v718
        %v720 = vpop.f32.mrf.mxu0
        %721 = vdwg.mxu0
        %v722 = vadd.f32 %v649, %v719
        %v723 = vxor.u32 %v722, 2147483648
        %v724 = vmul.f32 %v723, 1.442695
        %v725 = vpow.pop %v724
        %v726 = vadd.f32 %v725, 1.0
        %v727 = vrcp.pop %v726
        %v728 = vmul.f32 1.0, %v727
        %v729 = vtanh.pop %v722
        %v730 = vmul.f32 %v728, %v635
        %732 = vrot.lane.b32.xlu0 %v729, 64
        %v733 = vpop.permute.xlu0 %732
        %v735 = vmul.f32 %v728, %v733
        %737 = vrot.lane.b32.xlu0 %v735, 32
        %v738 = vpop.permute.xlu0 %737
        %v740 = vadd.f32 %v730, %v738
        %v741 = vtanh.pop %v740
        %743 = vrot.lane.b32.xlu0 %v741, 64
        %v744 = vpop.permute.xlu0 %743
        %v746 = vmul.f32 %v728, %v744
        %748 = vrot.lane.b32.xlu0 %v746, 32
        %v749 = vpop.permute.xlu0 %748
        %s751 = scalar_lea.vmem %s400, 8
        %752 = vst.msk [vmem:[%s751] sm:$0xf] %vm541, %v749
        %p753 = scmp.ne.s32.totalorder %s23, 2
        %s754 = scalar_select %p753, 1, 0
        %v755 = vstv %s754
        %vm756 = vcmp.eq.s32.totalorder %v755, 1
        %v757 = vsel %vm756, %v746, %v641
        %v758 = vsel %vm756, %v740, %v635
        %s759 = scalar_lea.vmem %s369, 12
        %v760 = vld [vmem:[%s759] sm:$0xf]
        %762 = vrot.lane.b32.xlu0 %v757, 32
        %v763 = vpop.permute.xlu0 %762
        %v764 = vsel %vm434, %v763, 0
        %766 = vmatprep.subr.mxu0 0.0
        %767 = vmatpush1.msra.mxu0 0.0
        %768 = vmatprep.subr.mxu0 0.0
        %769 = vmatpush1.msra.mxu0 0.0
        %770 = vmatprep.subr.mxu0 0.0
        %771 = vmatpush1.msra.mxu0 0.0
        %772 = vmatprep.subr.mxu0 0.0
        %773 = vmatpush1.msra.mxu0 0.0
        %774 = vmatprep.subr.mxu0 0.0
        %775 = vmatpush1.msra.mxu0 0.0
        %776 = vmatprep.subr.mxu0 0.0
        %777 = vmatpush1.msra.mxu0 0.0
        %778 = vmatprep.subr.mxu0 0.0
        %779 = vmatpush1.msra.mxu0 0.0
        %780 = vmatprep.subr.mxu0 0.0
        %781 = vmatpush1.msra.mxu0 0.0
        %782 = vmatprep.subr.mxu0 0.0
        %783 = vmatpush1.msra.mxu0 0.0
        %784 = vmatprep.subr.mxu0 0.0
        %785 = vmatpush1.msra.mxu0 0.0
        %786 = vmatprep.subr.mxu0 0.0
        %787 = vmatpush1.msra.mxu0 0.0
        %788 = vmatprep.subr.mxu0 0.0
        %789 = vmatpush1.msra.mxu0 0.0
        %790 = vmatprep.subr.mxu0 0.0
        %791 = vmatpush1.msra.mxu0 %v426
        %792 = vmatprep.subr.mxu0 0.0
        %793 = vmatpush1.msra.mxu0 %v425
        %794 = vmatprep.subr.mxu0 0.0
        %795 = vmatpush1.msra.mxu0 %v424
        %796 = vmatprep.subr.mxu0 0.0
        %797 = vmatpush1.msra.mxu0 %v423
        %798 = vmatprep.subr.mxu0 0.0
        %799 = vmatpush2.msra.mxu0 0.0
        %800 = vmatprep.subr.mxu0 0.0
        %801 = vmatpush2.msra.mxu0 0.0
        %802 = vmatprep.subr.mxu0 0.0
        %803 = vmatpush2.msra.mxu0 0.0
        %804 = vmatprep.subr.mxu0 0.0
        %805 = vmatpush2.msra.mxu0 0.0
        %806 = vmatprep.subr.mxu0 0.0
        %807 = vmatpush2.msra.mxu0 0.0
        %808 = vmatprep.subr.mxu0 0.0
        %809 = vmatpush2.msra.mxu0 0.0
        %810 = vmatprep.subr.mxu0 0.0
        %811 = vmatpush2.msra.mxu0 0.0
        %812 = vmatprep.subr.mxu0 0.0
        %813 = vmatpush2.msra.mxu0 0.0
        %814 = vmatprep.subr.mxu0 0.0
        %815 = vmatpush2.msra.mxu0 0.0
        %816 = vmatprep.subr.mxu0 0.0
        %817 = vmatpush2.msra.mxu0 0.0
        %818 = vmatprep.subr.mxu0 0.0
        %819 = vmatpush2.msra.mxu0 0.0
        %820 = vmatprep.subr.mxu0 0.0
        %821 = vmatpush2.msra.mxu0 0.0
        %822 = vmatprep.subr.mxu0 0.0
        %823 = vmatpush2.msra.mxu0 0.0
        %824 = vmatprep.subr.mxu0 0.0
        %825 = vmatpush2.msra.mxu0 0.0
        %826 = vmatprep.subr.mxu0 0.0
        %827 = vmatpush2.msra.mxu0 0.0
        %828 = vmatprep.subr.mxu0 0.0
        %829 = vmatpush2.msra.mxu0 0.0
        %830 = vmatprep.mubr.f32.mxu0 0.0
        %831 = vmatmul.mubr.f32.gmra.mxu0 %v764
        %v832 = vpop.f32.mrf.mxu0
        %v833 = vadd.f32 0.0, %v832
        %v834 = vpop.f32.mrf.mxu0
        %835 = vdwg.mxu0
        %v836 = vadd.f32 %v760, %v833
        %v837 = vxor.u32 %v836, 2147483648
        %v838 = vmul.f32 %v837, 1.442695
        %v839 = vpow.pop %v838
        %v840 = vadd.f32 %v839, 1.0
        %v841 = vrcp.pop %v840
        %v842 = vmul.f32 1.0, %v841
        %v843 = vtanh.pop %v836
        %v844 = vmul.f32 %v842, %v758
        %846 = vrot.lane.b32.xlu0 %v843, 64
        %v847 = vpop.permute.xlu0 %846
        %v849 = vmul.f32 %v842, %v847
        %851 = vrot.lane.b32.xlu0 %v849, 32
        %v852 = vpop.permute.xlu0 %851
        %v854 = vadd.f32 %v844, %v852
        %v855 = vtanh.pop %v854
        %857 = vrot.lane.b32.xlu0 %v855, 64
        %v858 = vpop.permute.xlu0 %857
        %v860 = vmul.f32 %v842, %v858
        %862 = vrot.lane.b32.xlu0 %v860, 32
        %v863 = vpop.permute.xlu0 %862
        %s865 = scalar_lea.vmem %s400, 12
        %866 = vst.msk [vmem:[%s865] sm:$0xf] %vm541, %v863
        %v867 = vsel %vm756, %v860, %v757
        %v868 = vsel %vm756, %v854, %v758
        %870 = vrot.lane.b32.xlu0 %v867, 32
        %v871 = vpop.permute.xlu0 %870
        %873 = vst.msk [vmem:[#allocation2] sm:$0xf] %vm541, %v871
        %875 = vrot.lane.b32.xlu0 %v868, 96
        %v876 = vpop.permute.xlu0 %875
        %878 = vst.msk [vmem:[#allocation3] sm:$0xf] %vm541, %v876
        %p879 = scmp.eq.s32.totalorder %s23, 2
        // Predicated region
        $region45: #{encoder_forward.2} parent=43 // pred_check
          %p880 = pneg %p879
        $region46: #{encoder_forward.2} parent=43 // pred_check_branch
          %882 = sbr.rel (%p880) target = $region48
        $region47: #{encoder_forward.2} parent=43 // pred_region
          %883 = vst.msk [vmem:[%s409] sm:$0xf] %vm541, %v871
          %884 = vst.msk [vmem:[%s413] sm:$0xf] %vm541, %v876
        $region48: #{encoder_forward.2} parent=43 // pred_fallthru
          _
      $region44: #{encoder_forward.2} parent=35 // pred_fallthru
        _
      %p885 = scmp.eq.s32.totalorder %s22, 1
      // Predicated region
      $region49: #{encoder_forward.2} parent=35 // pred_check
        %p886 = pneg %p885
      $region50: #{encoder_forward.2} parent=35 // pred_check_branch
        %888 = sbr.rel (%p886) target = $region52
      $region51: #{encoder_forward.2} parent=35 // pred_region
        %s889 = ssub.s32 2, %s23
        %v890 = vld [vmem:[#allocation2] sm:$0xf]
        %v891 = vld [vmem:[#allocation3] sm:$0xf]
        %s892 = scalar_lea.vmem %s369, 12
        %v893 = vld [vmem:[%s892] sm:$0xf]
        %vm894 = vcmask 261120
        %v896 = vsel %vm894, %v890, 0
        %898 = vmatprep.subr.mxu0 0.0
        %899 = vmatpush1.msra.mxu0 0.0
        %900 = vmatprep.subr.mxu0 0.0
        %901 = vmatpush1.msra.mxu0 0.0
        %902 = vmatprep.subr.mxu0 0.0
        %903 = vmatpush1.msra.mxu0 0.0
        %904 = vmatprep.subr.mxu0 0.0
        %905 = vmatpush1.msra.mxu0 0.0
        %906 = vmatprep.subr.mxu0 0.0
        %907 = vmatpush1.msra.mxu0 0.0
        %908 = vmatprep.subr.mxu0 0.0
        %909 = vmatpush1.msra.mxu0 0.0
        %910 = vmatprep.subr.mxu0 0.0
        %911 = vmatpush1.msra.mxu0 0.0
        %912 = vmatprep.subr.mxu0 0.0
        %913 = vmatpush1.msra.mxu0 0.0
        %914 = vmatprep.subr.mxu0 0.0
        %915 = vmatpush1.msra.mxu0 0.0
        %916 = vmatprep.subr.mxu0 0.0
        %917 = vmatpush1.msra.mxu0 0.0
        %918 = vmatprep.subr.mxu0 0.0
        %919 = vmatpush1.msra.mxu0 0.0
        %920 = vmatprep.subr.mxu0 0.0
        %921 = vmatpush1.msra.mxu0 0.0
        %922 = vmatprep.subr.mxu0 0.0
        %923 = vmatpush1.msra.mxu0 %v426
        %924 = vmatprep.subr.mxu0 0.0
        %925 = vmatpush1.msra.mxu0 %v425
        %926 = vmatprep.subr.mxu0 0.0
        %927 = vmatpush1.msra.mxu0 %v424
        %928 = vmatprep.subr.mxu0 0.0
        %929 = vmatpush1.msra.mxu0 %v423
        %930 = vmatprep.subr.mxu0 0.0
        %931 = vmatpush2.msra.mxu0 0.0
        %932 = vmatprep.subr.mxu0 0.0
        %933 = vmatpush2.msra.mxu0 0.0
        %934 = vmatprep.subr.mxu0 0.0
        %935 = vmatpush2.msra.mxu0 0.0
        %936 = vmatprep.subr.mxu0 0.0
        %937 = vmatpush2.msra.mxu0 0.0
        %938 = vmatprep.subr.mxu0 0.0
        %939 = vmatpush2.msra.mxu0 0.0
        %940 = vmatprep.subr.mxu0 0.0
        %941 = vmatpush2.msra.mxu0 0.0
        %942 = vmatprep.subr.mxu0 0.0
        %943 = vmatpush2.msra.mxu0 0.0
        %944 = vmatprep.subr.mxu0 0.0
        %945 = vmatpush2.msra.mxu0 0.0
        %946 = vmatprep.subr.mxu0 0.0
        %947 = vmatpush2.msra.mxu0 0.0
        %948 = vmatprep.subr.mxu0 0.0
        %949 = vmatpush2.msra.mxu0 0.0
        %950 = vmatprep.subr.mxu0 0.0
        %951 = vmatpush2.msra.mxu0 0.0
        %952 = vmatprep.subr.mxu0 0.0
        %953 = vmatpush2.msra.mxu0 0.0
        %954 = vmatprep.subr.mxu0 0.0
        %955 = vmatpush2.msra.mxu0 0.0
        %956 = vmatprep.subr.mxu0 0.0
        %957 = vmatpush2.msra.mxu0 0.0
        %958 = vmatprep.subr.mxu0 0.0
        %959 = vmatpush2.msra.mxu0 0.0
        %960 = vmatprep.subr.mxu0 0.0
        %961 = vmatpush2.msra.mxu0 0.0
        %962 = vmatprep.mubr.f32.mxu0 0.0
        %963 = vmatmul.mubr.f32.gmra.mxu0 %v896
        %v964 = vpop.f32.mrf.mxu0
        %v965 = vadd.f32 0.0, %v964
        %v966 = vpop.f32.mrf.mxu0
        %967 = vdwg.mxu0
        %v968 = vadd.f32 %v893, %v965
        %v969 = vxor.u32 %v968, 2147483648
        %v970 = vmul.f32 %v969, 1.442695
        %v971 = vpow.pop %v970
        %v972 = vadd.f32 %v971, 1.0
        %v973 = vrcp.pop %v972
        %v974 = vmul.f32 1.0, %v973
        %v975 = vtanh.pop %v968
        %977 = vrot.lane.b32.xlu0 %v891, 32
        %v978 = vpop.permute.xlu0 %977
        %v980 = vmul.f32 %v974, %v978
        %982 = vrot.lane.b32.xlu0 %v975, 64
        %v983 = vpop.permute.xlu0 %982
        %v985 = vmul.f32 %v974, %v983
        %987 = vrot.lane.b32.xlu0 %v985, 32
        %v988 = vpop.permute.xlu0 %987
        %v990 = vadd.f32 %v980, %v988
        %v991 = vtanh.pop %v990
        %993 = vrot.lane.b32.xlu0 %v991, 64
        %v994 = vpop.permute.xlu0 %993
        %v996 = vmul.f32 %v974, %v994
        %998 = vrot.lane.b32.xlu0 %v996, 32
        %v999 = vpop.permute.xlu0 %998
        %s1001 = scalar_lea.vmem %s400, 12
        %vm1002 = vcmask 257024
        %1003 = vst.msk [vmem:[%s1001] sm:$0xf] %vm1002, %v999
        %p1004 = scmp.ne.s32.totalorder %s889, 2
        %s1005 = scalar_select %p1004, 1, 0
        %v1006 = vstv %s1005
        %vm1007 = vcmp.eq.s32.totalorder %v1006, 1
        %1008 = vrot.lane.b32.xlu0 %v890, 96
        %v1009 = vpop.permute.xlu0 %1008
        %v1011 = vsel %vm1007, %v996, %v1009
        %v1012 = vsel %vm1007, %v990, %v978
        %s1013 = scalar_lea.vmem %s369, 8
        %v1014 = vld [vmem:[%s1013] sm:$0xf]
        %1016 = vrot.lane.b32.xlu0 %v1011, 32
        %v1017 = vpop.permute.xlu0 %1016
        %v1018 = vsel %vm894, %v1017, 0
        %1020 = vmatprep.subr.mxu0 0.0
        %1021 = vmatpush1.msra.mxu0 0.0
        %1022 = vmatprep.subr.mxu0 0.0
        %1023 = vmatpush1.msra.mxu0 0.0
        %1024 = vmatprep.subr.mxu0 0.0
        %1025 = vmatpush1.msra.mxu0 0.0
        %1026 = vmatprep.subr.mxu0 0.0
        %1027 = vmatpush1.msra.mxu0 0.0
        %1028 = vmatprep.subr.mxu0 0.0
        %1029 = vmatpush1.msra.mxu0 0.0
        %1030 = vmatprep.subr.mxu0 0.0
        %1031 = vmatpush1.msra.mxu0 0.0
        %1032 = vmatprep.subr.mxu0 0.0
        %1033 = vmatpush1.msra.mxu0 0.0
        %1034 = vmatprep.subr.mxu0 0.0
        %1035 = vmatpush1.msra.mxu0 0.0
        %1036 = vmatprep.subr.mxu0 0.0
        %1037 = vmatpush1.msra.mxu0 0.0
        %1038 = vmatprep.subr.mxu0 0.0
        %1039 = vmatpush1.msra.mxu0 0.0
        %1040 = vmatprep.subr.mxu0 0.0
        %1041 = vmatpush1.msra.mxu0 0.0
        %1042 = vmatprep.subr.mxu0 0.0
        %1043 = vmatpush1.msra.mxu0 0.0
        %1044 = vmatprep.subr.mxu0 0.0
        %1045 = vmatpush1.msra.mxu0 %v426
        %1046 = vmatprep.subr.mxu0 0.0
        %1047 = vmatpush1.msra.mxu0 %v425
        %1048 = vmatprep.subr.mxu0 0.0
        %1049 = vmatpush1.msra.mxu0 %v424
        %1050 = vmatprep.subr.mxu0 0.0
        %1051 = vmatpush1.msra.mxu0 %v423
        %1052 = vmatprep.subr.mxu0 0.0
        %1053 = vmatpush2.msra.mxu0 0.0
        %1054 = vmatprep.subr.mxu0 0.0
        %1055 = vmatpush2.msra.mxu0 0.0
        %1056 = vmatprep.subr.mxu0 0.0
        %1057 = vmatpush2.msra.mxu0 0.0
        %1058 = vmatprep.subr.mxu0 0.0
        %1059 = vmatpush2.msra.mxu0 0.0
        %1060 = vmatprep.subr.mxu0 0.0
        %1061 = vmatpush2.msra.mxu0 0.0
        %1062 = vmatprep.subr.mxu0 0.0
        %1063 = vmatpush2.msra.mxu0 0.0
        %1064 = vmatprep.subr.mxu0 0.0
        %1065 = vmatpush2.msra.mxu0 0.0
        %1066 = vmatprep.subr.mxu0 0.0
        %1067 = vmatpush2.msra.mxu0 0.0
        %1068 = vmatprep.subr.mxu0 0.0
        %1069 = vmatpush2.msra.mxu0 0.0
        %1070 = vmatprep.subr.mxu0 0.0
        %1071 = vmatpush2.msra.mxu0 0.0
        %1072 = vmatprep.subr.mxu0 0.0
        %1073 = vmatpush2.msra.mxu0 0.0
        %1074 = vmatprep.subr.mxu0 0.0
        %1075 = vmatpush2.msra.mxu0 0.0
        %1076 = vmatprep.subr.mxu0 0.0
        %1077 = vmatpush2.msra.mxu0 0.0
        %1078 = vmatprep.subr.mxu0 0.0
        %1079 = vmatpush2.msra.mxu0 0.0
        %1080 = vmatprep.subr.mxu0 0.0
        %1081 = vmatpush2.msra.mxu0 0.0
        %1082 = vmatprep.subr.mxu0 0.0
        %1083 = vmatpush2.msra.mxu0 0.0
        %1084 = vmatprep.mubr.f32.mxu0 0.0
        %1085 = vmatmul.mubr.f32.gmra.mxu0 %v1018
        %v1086 = vpop.f32.mrf.mxu0
        %v1087 = vadd.f32 0.0, %v1086
        %v1088 = vpop.f32.mrf.mxu0
        %1089 = vdwg.mxu0
        %v1090 = vadd.f32 %v1014, %v1087
        %v1091 = vxor.u32 %v1090, 2147483648
        %v1092 = vmul.f32 %v1091, 1.442695
        %v1093 = vpow.pop %v1092
        %v1094 = vadd.f32 %v1093, 1.0
        %v1095 = vrcp.pop %v1094
        %v1096 = vmul.f32 1.0, %v1095
        %v1097 = vtanh.pop %v1090
        %v1098 = vmul.f32 %v1096, %v1012
        %1100 = vrot.lane.b32.xlu0 %v1097, 64
        %v1101 = vpop.permute.xlu0 %1100
        %v1103 = vmul.f32 %v1096, %v1101
        %1105 = vrot.lane.b32.xlu0 %v1103, 32
        %v1106 = vpop.permute.xlu0 %1105
        %v1108 = vadd.f32 %v1098, %v1106
        %v1109 = vtanh.pop %v1108
        %1111 = vrot.lane.b32.xlu0 %v1109, 64
        %v1112 = vpop.permute.xlu0 %1111
        %v1114 = vmul.f32 %v1096, %v1112
        %1116 = vrot.lane.b32.xlu0 %v1114, 32
        %v1117 = vpop.permute.xlu0 %1116
        %s1119 = scalar_lea.vmem %s400, 8
        %1120 = vst.msk [vmem:[%s1119] sm:$0xf] %vm1002, %v1117
        %v1121 = vsel %vm1007, %v1114, %v1011
        %v1122 = vsel %vm1007, %v1108, %v1012
        %s1123 = scalar_lea.vmem %s369, 4
        %v1124 = vld [vmem:[%s1123] sm:$0xf]
        %1126 = vrot.lane.b32.xlu0 %v1121, 32
        %v1127 = vpop.permute.xlu0 %1126
        %v1128 = vsel %vm894, %v1127, 0
        %1130 = vmatprep.subr.mxu0 0.0
        %1131 = vmatpush1.msra.mxu0 0.0
        %1132 = vmatprep.subr.mxu0 0.0
        %1133 = vmatpush1.msra.mxu0 0.0
        %1134 = vmatprep.subr.mxu0 0.0
        %1135 = vmatpush1.msra.mxu0 0.0
        %1136 = vmatprep.subr.mxu0 0.0
        %1137 = vmatpush1.msra.mxu0 0.0
        %1138 = vmatprep.subr.mxu0 0.0
        %1139 = vmatpush1.msra.mxu0 0.0
        %1140 = vmatprep.subr.mxu0 0.0
        %1141 = vmatpush1.msra.mxu0 0.0
        %1142 = vmatprep.subr.mxu0 0.0
        %1143 = vmatpush1.msra.mxu0 0.0
        %1144 = vmatprep.subr.mxu0 0.0
        %1145 = vmatpush1.msra.mxu0 0.0
        %1146 = vmatprep.subr.mxu0 0.0
        %1147 = vmatpush1.msra.mxu0 0.0
        %1148 = vmatprep.subr.mxu0 0.0
        %1149 = vmatpush1.msra.mxu0 0.0
        %1150 = vmatprep.subr.mxu0 0.0
        %1151 = vmatpush1.msra.mxu0 0.0
        %1152 = vmatprep.subr.mxu0 0.0
        %1153 = vmatpush1.msra.mxu0 0.0
        %1154 = vmatprep.subr.mxu0 0.0
        %1155 = vmatpush1.msra.mxu0 %v426
        %1156 = vmatprep.subr.mxu0 0.0
        %1157 = vmatpush1.msra.mxu0 %v425
        %1158 = vmatprep.subr.mxu0 0.0
        %1159 = vmatpush1.msra.mxu0 %v424
        %1160 = vmatprep.subr.mxu0 0.0
        %1161 = vmatpush1.msra.mxu0 %v423
        %1162 = vmatprep.subr.mxu0 0.0
        %1163 = vmatpush2.msra.mxu0 0.0
        %1164 = vmatprep.subr.mxu0 0.0
        %1165 = vmatpush2.msra.mxu0 0.0
        %1166 = vmatprep.subr.mxu0 0.0
        %1167 = vmatpush2.msra.mxu0 0.0
        %1168 = vmatprep.subr.mxu0 0.0
        %1169 = vmatpush2.msra.mxu0 0.0
        %1170 = vmatprep.subr.mxu0 0.0
        %1171 = vmatpush2.msra.mxu0 0.0
        %1172 = vmatprep.subr.mxu0 0.0
        %1173 = vmatpush2.msra.mxu0 0.0
        %1174 = vmatprep.subr.mxu0 0.0
        %1175 = vmatpush2.msra.mxu0 0.0
        %1176 = vmatprep.subr.mxu0 0.0
        %1177 = vmatpush2.msra.mxu0 0.0
        %1178 = vmatprep.subr.mxu0 0.0
        %1179 = vmatpush2.msra.mxu0 0.0
        %1180 = vmatprep.subr.mxu0 0.0
        %1181 = vmatpush2.msra.mxu0 0.0
        %1182 = vmatprep.subr.mxu0 0.0
        %1183 = vmatpush2.msra.mxu0 0.0
        %1184 = vmatprep.subr.mxu0 0.0
        %1185 = vmatpush2.msra.mxu0 0.0
        %1186 = vmatprep.subr.mxu0 0.0
        %1187 = vmatpush2.msra.mxu0 0.0
        %1188 = vmatprep.subr.mxu0 0.0
        %1189 = vmatpush2.msra.mxu0 0.0
        %1190 = vmatprep.subr.mxu0 0.0
        %1191 = vmatpush2.msra.mxu0 0.0
        %1192 = vmatprep.subr.mxu0 0.0
        %1193 = vmatpush2.msra.mxu0 0.0
        %1194 = vmatprep.mubr.f32.mxu0 0.0
        %1195 = vmatmul.mubr.f32.gmra.mxu0 %v1128
        %v1196 = vpop.f32.mrf.mxu0
        %v1197 = vadd.f32 0.0, %v1196
        %v1198 = vpop.f32.mrf.mxu0
        %1199 = vdwg.mxu0
        %v1200 = vadd.f32 %v1124, %v1197
        %v1201 = vxor.u32 %v1200, 2147483648
        %v1202 = vmul.f32 %v1201, 1.442695
        %v1203 = vpow.pop %v1202
        %v1204 = vadd.f32 %v1203, 1.0
        %v1205 = vrcp.pop %v1204
        %v1206 = vmul.f32 1.0, %v1205
        %v1207 = vtanh.pop %v1200
        %v1208 = vmul.f32 %v1206, %v1122
        %1210 = vrot.lane.b32.xlu0 %v1207, 64
        %v1211 = vpop.permute.xlu0 %1210
        %v1213 = vmul.f32 %v1206, %v1211
        %1215 = vrot.lane.b32.xlu0 %v1213, 32
        %v1216 = vpop.permute.xlu0 %1215
        %v1218 = vadd.f32 %v1208, %v1216
        %v1219 = vtanh.pop %v1218
        %1221 = vrot.lane.b32.xlu0 %v1219, 64
        %v1222 = vpop.permute.xlu0 %1221
        %v1224 = vmul.f32 %v1206, %v1222
        %1226 = vrot.lane.b32.xlu0 %v1224, 32
        %v1227 = vpop.permute.xlu0 %1226
        %s1229 = scalar_lea.vmem %s400, 4
        %1230 = vst.msk [vmem:[%s1229] sm:$0xf] %vm1002, %v1227
        %v1231 = vld [vmem:[%s369] sm:$0xf]
        %v1232 = vsel %vm894, %v1227, 0
        %1234 = vmatprep.subr.mxu0 0.0
        %1235 = vmatpush1.msra.mxu0 0.0
        %1236 = vmatprep.subr.mxu0 0.0
        %1237 = vmatpush1.msra.mxu0 0.0
        %1238 = vmatprep.subr.mxu0 0.0
        %1239 = vmatpush1.msra.mxu0 0.0
        %1240 = vmatprep.subr.mxu0 0.0
        %1241 = vmatpush1.msra.mxu0 0.0
        %1242 = vmatprep.subr.mxu0 0.0
        %1243 = vmatpush1.msra.mxu0 0.0
        %1244 = vmatprep.subr.mxu0 0.0
        %1245 = vmatpush1.msra.mxu0 0.0
        %1246 = vmatprep.subr.mxu0 0.0
        %1247 = vmatpush1.msra.mxu0 0.0
        %1248 = vmatprep.subr.mxu0 0.0
        %1249 = vmatpush1.msra.mxu0 0.0
        %1250 = vmatprep.subr.mxu0 0.0
        %1251 = vmatpush1.msra.mxu0 0.0
        %1252 = vmatprep.subr.mxu0 0.0
        %1253 = vmatpush1.msra.mxu0 0.0
        %1254 = vmatprep.subr.mxu0 0.0
        %1255 = vmatpush1.msra.mxu0 0.0
        %1256 = vmatprep.subr.mxu0 0.0
        %1257 = vmatpush1.msra.mxu0 0.0
        %1258 = vmatprep.subr.mxu0 0.0
        %1259 = vmatpush1.msra.mxu0 %v426
        %1260 = vmatprep.subr.mxu0 0.0
        %1261 = vmatpush1.msra.mxu0 %v425
        %1262 = vmatprep.subr.mxu0 0.0
        %1263 = vmatpush1.msra.mxu0 %v424
        %1264 = vmatprep.subr.mxu0 0.0
        %1265 = vmatpush1.msra.mxu0 %v423
        %1266 = vmatprep.subr.mxu0 0.0
        %1267 = vmatpush2.msra.mxu0 0.0
        %1268 = vmatprep.subr.mxu0 0.0
        %1269 = vmatpush2.msra.mxu0 0.0
        %1270 = vmatprep.subr.mxu0 0.0
        %1271 = vmatpush2.msra.mxu0 0.0
        %1272 = vmatprep.subr.mxu0 0.0
        %1273 = vmatpush2.msra.mxu0 0.0
        %1274 = vmatprep.subr.mxu0 0.0
        %1275 = vmatpush2.msra.mxu0 0.0
        %1276 = vmatprep.subr.mxu0 0.0
        %1277 = vmatpush2.msra.mxu0 0.0
        %1278 = vmatprep.subr.mxu0 0.0
        %1279 = vmatpush2.msra.mxu0 0.0
        %1280 = vmatprep.subr.mxu0 0.0
        %1281 = vmatpush2.msra.mxu0 0.0
        %1282 = vmatprep.subr.mxu0 0.0
        %1283 = vmatpush2.msra.mxu0 0.0
        %1284 = vmatprep.subr.mxu0 0.0
        %1285 = vmatpush2.msra.mxu0 0.0
        %1286 = vmatprep.subr.mxu0 0.0
        %1287 = vmatpush2.msra.mxu0 0.0
        %1288 = vmatprep.subr.mxu0 0.0
        %1289 = vmatpush2.msra.mxu0 0.0
        %1290 = vmatprep.subr.mxu0 0.0
        %1291 = vmatpush2.msra.mxu0 0.0
        %1292 = vmatprep.subr.mxu0 0.0
        %1293 = vmatpush2.msra.mxu0 0.0
        %1294 = vmatprep.subr.mxu0 0.0
        %1295 = vmatpush2.msra.mxu0 0.0
        %1296 = vmatprep.subr.mxu0 0.0
        %1297 = vmatpush2.msra.mxu0 0.0
        %1298 = vmatprep.mubr.f32.mxu0 0.0
        %1299 = vmatmul.mubr.f32.gmra.mxu0 %v1232
        %v1300 = vpop.f32.mrf.mxu0
        %v1301 = vadd.f32 0.0, %v1300
        %v1302 = vpop.f32.mrf.mxu0
        %1303 = vdwg.mxu0
        %v1304 = vadd.f32 %v1231, %v1301
        %v1305 = vxor.u32 %v1304, 2147483648
        %v1306 = vmul.f32 %v1305, 1.442695
        %v1307 = vpow.pop %v1306
        %v1308 = vadd.f32 %v1307, 1.0
        %v1309 = vrcp.pop %v1308
        %v1310 = vmul.f32 1.0, %v1309
        %v1311 = vtanh.pop %v1304
        %v1312 = vmul.f32 %v1310, %v1218
        %1314 = vrot.lane.b32.xlu0 %v1311, 64
        %v1315 = vpop.permute.xlu0 %1314
        %v1317 = vmul.f32 %v1310, %v1315
        %1319 = vrot.lane.b32.xlu0 %v1317, 32
        %v1320 = vpop.permute.xlu0 %1319
        %v1322 = vadd.f32 %v1312, %v1320
        %v1323 = vtanh.pop %v1322
        %1325 = vrot.lane.b32.xlu0 %v1323, 64
        %v1326 = vpop.permute.xlu0 %1325
        %v1328 = vmul.f32 %v1310, %v1326
        %1330 = vrot.lane.b32.xlu0 %v1328, 32
        %v1331 = vpop.permute.xlu0 %1330
        %1333 = vst.msk [vmem:[%s400] sm:$0xf] %vm1002, %v1331
        %1334 = vst.msk [vmem:[#allocation2] sm:$0xf] %vm1002, %v1331
        %1336 = vrot.lane.b32.xlu0 %v1322, 96
        %v1337 = vpop.permute.xlu0 %1336
        %1339 = vst.msk [vmem:[#allocation3] sm:$0xf] %vm1002, %v1337
        %p1340 = scmp.eq.s32.totalorder %s23, 2
        // Predicated region
        $region53: #{encoder_forward.2} parent=51 // pred_check
          %p1341 = pneg %p1340
        $region54: #{encoder_forward.2} parent=51 // pred_check_branch
          %1343 = sbr.rel (%p1341) target = $region56
        $region55: #{encoder_forward.2} parent=51 // pred_region
          %1344 = vst.msk [vmem:[%s409] sm:$0xf] %vm1002, %v1331
          %1345 = vst.msk [vmem:[%s413] sm:$0xf] %vm1002, %v1337
        $region56: #{encoder_forward.2} parent=51 // pred_fallthru
          _
      $region52: #{encoder_forward.2} parent=35 // pred_fallthru
        _
      %s1346 = smul.u32 %s22, 2
      %s1347 = ssub.s32 1, %s1346
      %s1348 = smul.u32 %s1347, %s23
      %s1349 = sadd.s32 %s1346, %s1348
      %s1350 = smul.u32 4, %s1349
      %p1351 = scmp.lt.s32.totalorder %s22, 1
      %s1352 = scalar_select %p1351, %s22, 1
      %p1353 = scmp.lt.s32.totalorder %s1350, 11
      %s1354 = scalar_select %p1353, %s1350, 11
      %s1355 = smul.addr %s1352, 12
      %s1356 = sadd.s32 %s1354, %s1355
      %s1357 = smul.addr %s1356, 4
      %s1358 = scalar_lea.vmem %s4, %s1357
      %p1359 = scmp.lt.s32.totalorder %s22, 1
      %s1360 = scalar_select %p1359, %s22, 1
      %s1361 = smul.addr %s1360, 4
      %s1362 = scalar_lea.vmem %s5, %s1361
      %p1363 = scmp.lt.s32.totalorder %s22, 1
      %s1364 = scalar_select %p1363, %s22, 1
      %s1365 = smul.addr %s1364, 4
      %s1366 = scalar_lea.vmem %s6, %s1365
      // Predicated region
      $region57: #{encoder_forward.2} parent=35 // pred_check
        %p1367 = pneg %p172
      $region58: #{encoder_forward.2} parent=35 // pred_check_branch
        %1369 = sbr.rel (%p1367) target = $region60
      $region59: #{encoder_forward.2} parent=35 // pred_region
        %s1370 = smul.u32 %s22, 2
        %s1371 = ssub.s32 1, %s1370
        %s1372 = smul.u32 %s1371, %s23
        %s1373 = sadd.s32 %s1370, %s1372
        %s1374 = smul.u32 4, %s1373
      $region60: #{encoder_forward.2} parent=35 // pred_fallthru
        _
      // Predicated region
      $region61: #{encoder_forward.2} parent=35 // pred_check
        %p1375 = pneg %p198
      $region62: #{encoder_forward.2} parent=35 // pred_check_branch
        %1377 = sbr.rel (%p1375) target = $region64
      $region63: #{encoder_forward.2} parent=35 // pred_region
        _
      $region64: #{encoder_forward.2} parent=35 // pred_fallthru
        _
      // Predicated region
      $region65: #{encoder_forward.2} parent=35 // pred_check
        %p1378 = pneg %p224
      $region66: #{encoder_forward.2} parent=35 // pred_check_branch
        %1380 = sbr.rel (%p1378) target = $region68
      $region67: #{encoder_forward.2} parent=35 // pred_region
        _
      $region68: #{encoder_forward.2} parent=35 // pred_fallthru
        _
    $region36: #{encoder_forward.2} parent=5 // pred_fallthru
      _
    %p1381 = scmp.le.s32.totalorder 2, %s13
    // Predicated region
    $region69: #{encoder_forward.2} parent=5 // pred_check
      %p1382 = pneg %p1381
    $region70: #{encoder_forward.2} parent=5 // pred_check_branch
      %1384 = sbr.rel (%p1382) target = $region72
    $region71: #{encoder_forward.2} parent=5 // pred_region
      %s1385 = ssub.s32 %s13, 2
      // Predicated region
      $region73: #{encoder_forward.2} parent=71 // pred_check
        %p1386 = pneg %p178
      $region74: #{encoder_forward.2} parent=71 // pred_check_branch
        %1388 = sbr.rel (%p1386) target = $region76
      $region75: #{encoder_forward.2} parent=71 // pred_region
        %s1389 = smul.u32 %s24, 2
        %s1390 = ssub.s32 1, %s1389
        %s1391 = smul.u32 %s1390, %s25
        %s1392 = sadd.s32 %s1389, %s1391
        %s1393 = smul.u32 4, %s1392
        %p1394 = scmp.lt.s32.totalorder %s24, 1
        %s1395 = scalar_select %p1394, %s24, 1
        %p1396 = scmp.lt.s32.totalorder %s1393, 11
        %s1397 = scalar_select %p1396, %s1393, 11
        %s1398 = smul.addr %s1395, 12
        %s1399 = sadd.s32 %s1397, %s1398
        %s1400 = smul.addr %s1399, 4
        %s1401 = scalar_lea.vmem %s4, %s1400
      $region76: #{encoder_forward.2} parent=71 // pred_fallthru
        _
      // Predicated region
      $region77: #{encoder_forward.2} parent=71 // pred_check
        %p1402 = pneg %p204
      $region78: #{encoder_forward.2} parent=71 // pred_check_branch
        %1404 = sbr.rel (%p1402) target = $region80
      $region79: #{encoder_forward.2} parent=71 // pred_region
        %p1405 = scmp.lt.s32.totalorder %s24, 1
        %s1406 = scalar_select %p1405, %s24, 1
        %s1407 = smul.addr %s1406, 4
        %s1408 = scalar_lea.vmem %s5, %s1407
      $region80: #{encoder_forward.2} parent=71 // pred_fallthru
        _
      // Predicated region
      $region81: #{encoder_forward.2} parent=71 // pred_check
        %p1409 = pneg %p230
      $region82: #{encoder_forward.2} parent=71 // pred_check_branch
        %1411 = sbr.rel (%p1409) target = $region84
      $region83: #{encoder_forward.2} parent=71 // pred_region
        %p1412 = scmp.lt.s32.totalorder %s24, 1
        %s1413 = scalar_select %p1412, %s24, 1
        %s1414 = smul.addr %s1413, 4
        %s1415 = scalar_lea.vmem %s6, %s1414
      $region84: #{encoder_forward.2} parent=71 // pred_fallthru
        _
    $region72: #{encoder_forward.2} parent=5 // pred_fallthru
      _
  $region6: #{encoder_forward.2} parent=0 // loop_footer
    %s17 = sadd.s32 1, %s13
  $region7: #{encoder_forward.2} parent=0 // loop_footer_branch
    %12 = sbr.rel target = $region3
  $region8: #{encoder_forward.2} parent=0 // loop_exit
    _

</llo_original>
